<compile_context>
chip_gen: v6e
topology: v6e:2x2x1
jax: 0.10.0
libtpu: 0.0.40
codegen_flags: <defaults>
</compile_context>

<pallas_src>
import functools

import jax
import jax.numpy as jnp
from jax.experimental import pallas as pl
from jax.experimental.pallas import tpu as pltpu


def _conv3x3_s2_kernel(x_ref, w_ref, o_ref, xp_ref, patch_ref, *,
                       n, h_in, w_in, c, oh, ow, kh_sz, kw_sz, stride, pad):
    """Fused pad + im2col + single long-K matmul for the whole batch.

    x_ref:     [N, H, W, C]          f32   NHWC activations
    w_ref:     [KH*KW*C, OC]         bf16  pre-flattened weights
    o_ref:     [N, OH, OW, OC]       f32
    xp_ref:    [N, H+2p, W+2p, C]    f32   VMEM scratch (zero-padded input)
    patch_ref: [N*OH*OW, KH*KW*C]    bf16  VMEM scratch (im2col patch matrix)
    """
    oc = w_ref.shape[-1]
    m = n * oh * ow

    # 1) Zero-pad into VMEM scratch (replaces a wrapper-side jnp.pad HBM pass).
    xp_ref[...] = jnp.zeros_like(xp_ref)
    xp_ref[:, pad:pad + h_in, pad:pad + w_in, :] = x_ref[...]

    # 2) Fused im2col: each 3x3 tap is a stride-2 slab of the padded input;
    #    stage it (cast to bf16) into its contiguous C-wide column block of the
    #    [M, KH*KW*C] patch matrix so the matmul below has one long contiguous K.
    for kh in range(kh_sz):
        for kw in range(kw_sz):
            tap = kh * kw_sz + kw
            slab = xp_ref[:, pl.ds(kh, oh, stride), pl.ds(kw, ow, stride), :]
            patch_ref[:, tap * c:(tap + 1) * c] = (
                slab.reshape(m, c).astype(jnp.bfloat16))

    # 3) One long-K MXU matmul: [M, KH*KW*C] @ [KH*KW*C, OC], f32 accumulation.
    acc = jnp.dot(patch_ref[...], w_ref[...],
                  preferred_element_type=jnp.float32)
    o_ref[...] = acc.reshape(n, oh, ow, oc).astype(o_ref.dtype)


def prepare_conv_weight(weight_ochw):
    """[OC, C, KH, KW] f32 -> [KH*KW*C, OC] bf16.  Call ONCE at model init."""
    oc, c, kh, kw = weight_ochw.shape
    w = jnp.transpose(weight_ochw, (2, 3, 1, 0)).reshape(kh * kw * c, oc)
    return w.astype(jnp.bfloat16)


def conv2d_3x3_s2_p1_pallas(x_nchw, w_flat, *, kh=3, kw=3, stride=2, pad=1):
    """Conv2d(C->OC, 3x3, stride=2, pad=1, bias=False).

    x_nchw: [N, C, H, W] f32.  w_flat: [KH*KW*C, OC] bf16 (prepare_conv_weight).
    """
    N, C, H, W = x_nchw.shape
    K, OC = w_flat.shape
    assert K == kh * kw * C
    OH = (H + 2 * pad - kh) // stride + 1
    OW = (W + 2 * pad - kw) // stride + 1
    HP, WP = H + 2 * pad, W + 2 * pad

    # Only remaining input-side wrapper pass: NCHW -> NHWC (lane-dense channels).
    x_nhwc = jnp.transpose(x_nchw, (0, 2, 3, 1))

    kernel = functools.partial(
        _conv3x3_s2_kernel, n=N, h_in=H, w_in=W, c=C, oh=OH, ow=OW,
        kh_sz=kh, kw_sz=kw, stride=stride, pad=pad)

    flops = 2 * N * OH * OW * K * OC
    bytes_accessed = x_nhwc.size * 4 + w_flat.size * 2 + N * OH * OW * OC * 4

    # Single invocation (no grid): whole problem fits comfortably in VMEM on
    # every generation (~1.5 MiB incl. scratch, well under v7x's 32 MiB scoped).
    # TODO(synk): for large H/W add an output-row grid axis ("parallel" on v7x)
    # with per-generation tile sizing; unnecessary at these shapes.
    out = pl.pallas_call(
        kernel,
        out_shape=jax.ShapeDtypeStruct((N, OH, OW, OC), jnp.float32),
        scratch_shapes=[
            pltpu.VMEM((N, HP, WP, C), jnp.float32),      # zero-padded input
            pltpu.VMEM((N * OH * OW, K), jnp.bfloat16),   # im2col patch matrix
        ],
        cost_estimate=pl.CostEstimate(
            flops=flops, transcendentals=0, bytes_accessed=bytes_accessed),
    )(x_nhwc, w_flat)

    # [N, OH, OW, OC] -> NCHW (preserve the PyTorch interface).
    return jnp.transpose(out, (0, 3, 1, 2))


def simplenet_forward(x_nchw, w_flat):
    # forward(x) = self.conv(x)   (conv2/conv3/relu are unused in forward)
    return conv2d_3x3_s2_p1_pallas(x_nchw, w_flat)


if __name__ == "__main__":
    key = jax.random.PRNGKey(0)
    kx, kw_key = jax.random.split(key)

    N, C, H, W = 2, 64, 16, 16
    OC, KH, KW = 128, 3, 3

    x = jax.random.normal(kx, (N, C, H, W), dtype=jnp.float32)
    # Deterministic synthetic Conv2d(64,128,(3,3)) weights, kaiming-like scale.
    fan_in = C * KH * KW
    w = jax.random.normal(kw_key, (OC, C, KH, KW), dtype=jnp.float32) * (1.0 / fan_in) ** 0.5

    # Weight relayout hoisted out of the forward path (done once at "init").
    w_flat = jax.block_until_ready(prepare_conv_weight(w))

    y = jax.jit(simplenet_forward)(x, w_flat)
    jax.block_until_ready(y)
    assert y.shape == (N, OC, 8, 8), y.shape

    # Tight check vs. bf16-operand / f32-accumulate XLA conv (same numerics as
    # the kernel); loose sanity check vs. the full-f32 conv.
    conv_kwargs = dict(
        window_strides=(2, 2), padding=((1, 1), (1, 1)),
        dimension_numbers=("NCHW", "OIHW", "NCHW"),
    )
    y_bf16_ref = jax.lax.conv_general_dilated(
        x.astype(jnp.bfloat16), w.astype(jnp.bfloat16),
        preferred_element_type=jnp.float32, **conv_kwargs)
    y_f32_ref = jax.lax.conv_general_dilated(x, w, **conv_kwargs)

    err_tight = float(jnp.max(jnp.abs(y - y_bf16_ref)))
    err_loose = float(jnp.max(jnp.abs(y - y_f32_ref)))
    assert err_tight < 5e-3, err_tight
    assert err_loose < 1e-1, err_loose

    print("KERNEL_OK")
</pallas_src>

<mosaic_0001>
module attributes {stable_mosaic.version = 11 : i64} {
  func.func @_conv3x3_s2_kernel(%arg0: memref<2x16x16x64xf32, #tpu.memory_space<vmem>>, %arg1: memref<576x128xbf16, #tpu.memory_space<vmem>>, %arg2: memref<2x8x8x128xf32, #tpu.memory_space<vmem>>, %arg3: memref<2x18x18x64xf32, #tpu.memory_space<vmem>>, %arg4: memref<128x576xbf16, #tpu.memory_space<vmem>>) attributes {dimension_semantics = [], scalar_prefetch = 0 : i64, scratch_operands = 2 : i64, tpu.core_type = #tpu.core_type<tc>} {
    %cst = arith.constant 0.000000e+00 : f32
    %0 = vector.broadcast %cst : f32 to vector<2x18x18x64xf32>
    %c0 = arith.constant 0 : index
    %c0_0 = arith.constant 0 : index
    %c0_1 = arith.constant 0 : index
    %c0_2 = arith.constant 0 : index
    %1 = vector.load %arg3[%c0, %c0_0, %c0_1, %c0_2] : memref<2x18x18x64xf32, #tpu.memory_space<vmem>>, vector<2x18x18x64xf32>
    tpu.vector_store %arg3[%c0, %c0_0, %c0_1, %c0_2], %0 {strides = array<i32>} : memref<2x18x18x64xf32, #tpu.memory_space<vmem>>, vector<2x18x18x64xf32>,
    %c0_3 = arith.constant 0 : index
    %c0_4 = arith.constant 0 : index
    %c0_5 = arith.constant 0 : index
    %c0_6 = arith.constant 0 : index
    %2 = vector.load %arg0[%c0_3, %c0_4, %c0_5, %c0_6] : memref<2x16x16x64xf32, #tpu.memory_space<vmem>>, vector<2x16x16x64xf32>
    %c0_7 = arith.constant 0 : index
    %c1 = arith.constant 1 : index
    %c1_8 = arith.constant 1 : index
    %c0_9 = arith.constant 0 : index
    %3 = vector.load %arg3[%c0_7, %c1, %c1_8, %c0_9] : memref<2x18x18x64xf32, #tpu.memory_space<vmem>>, vector<2x16x16x64xf32>
    tpu.vector_store %arg3[%c0_7, %c1, %c1_8, %c0_9], %2 {strides = array<i32>} : memref<2x18x18x64xf32, #tpu.memory_space<vmem>>, vector<2x16x16x64xf32>,
    %c0_10 = arith.constant 0 : index
    %c0_11 = arith.constant 0 : index
    %c0_12 = arith.constant 0 : index
    %c0_13 = arith.constant 0 : index
    %4 = tpu.strided_load %arg3[%c0_10, %c0_11, %c0_12, %c0_13] {strides = array<i32: 1, 2, 2, 1>} : memref<2x18x18x64xf32, #tpu.memory_space<vmem>>, vector<2x8x8x64xf32>
    %5 = vector.shape_cast %4 : vector<2x8x8x64xf32> to vector<128x64xf32>
    %6 = arith.truncf %5 : vector<128x64xf32> to vector<128x64xbf16>
    %c0_14 = arith.constant 0 : index
    %c0_15 = arith.constant 0 : index
    %7 = vector.load %arg4[%c0_14, %c0_15] : memref<128x576xbf16, #tpu.memory_space<vmem>>, vector<128x64xbf16>
    tpu.vector_store %arg4[%c0_14, %c0_15], %6 {strides = array<i32>} : memref<128x576xbf16, #tpu.memory_space<vmem>>, vector<128x64xbf16>,
    %c0_16 = arith.constant 0 : index
    %c0_17 = arith.constant 0 : index
    %c1_18 = arith.constant 1 : index
    %c0_19 = arith.constant 0 : index
    %8 = tpu.strided_load %arg3[%c0_16, %c0_17, %c1_18, %c0_19] {strides = array<i32: 1, 2, 2, 1>} : memref<2x18x18x64xf32, #tpu.memory_space<vmem>>, vector<2x8x8x64xf32>
    %9 = vector.shape_cast %8 : vector<2x8x8x64xf32> to vector<128x64xf32>
    %10 = arith.truncf %9 : vector<128x64xf32> to vector<128x64xbf16>
    %c0_20 = arith.constant 0 : index
    %c64 = arith.constant 64 : index
    %11 = vector.load %arg4[%c0_20, %c64] : memref<128x576xbf16, #tpu.memory_space<vmem>>, vector<128x64xbf16>
    tpu.vector_store %arg4[%c0_20, %c64], %10 {strides = array<i32>} : memref<128x576xbf16, #tpu.memory_space<vmem>>, vector<128x64xbf16>,
    %c0_21 = arith.constant 0 : index
    %c0_22 = arith.constant 0 : index
    %c2 = arith.constant 2 : index
    %c0_23 = arith.constant 0 : index
    %12 = tpu.strided_load %arg3[%c0_21, %c0_22, %c2, %c0_23] {strides = array<i32: 1, 2, 2, 1>} : memref<2x18x18x64xf32, #tpu.memory_space<vmem>>, vector<2x8x8x64xf32>
    %13 = vector.shape_cast %12 : vector<2x8x8x64xf32> to vector<128x64xf32>
    %14 = arith.truncf %13 : vector<128x64xf32> to vector<128x64xbf16>
    %c0_24 = arith.constant 0 : index
    %c128 = arith.constant 128 : index
    %15 = vector.load %arg4[%c0_24, %c128] : memref<128x576xbf16, #tpu.memory_space<vmem>>, vector<128x64xbf16>
    tpu.vector_store %arg4[%c0_24, %c128], %14 {strides = array<i32>} : memref<128x576xbf16, #tpu.memory_space<vmem>>, vector<128x64xbf16>,
    %c0_25 = arith.constant 0 : index
    %c1_26 = arith.constant 1 : index
    %c0_27 = arith.constant 0 : index
    %c0_28 = arith.constant 0 : index
    %16 = tpu.strided_load %arg3[%c0_25, %c1_26, %c0_27, %c0_28] {strides = array<i32: 1, 2, 2, 1>} : memref<2x18x18x64xf32, #tpu.memory_space<vmem>>, vector<2x8x8x64xf32>
    %17 = vector.shape_cast %16 : vector<2x8x8x64xf32> to vector<128x64xf32>
    %18 = arith.truncf %17 : vector<128x64xf32> to vector<128x64xbf16>
    %c0_29 = arith.constant 0 : index
    %c192 = arith.constant 192 : index
    %19 = vector.load %arg4[%c0_29, %c192] : memref<128x576xbf16, #tpu.memory_space<vmem>>, vector<128x64xbf16>
    tpu.vector_store %arg4[%c0_29, %c192], %18 {strides = array<i32>} : memref<128x576xbf16, #tpu.memory_space<vmem>>, vector<128x64xbf16>,
    %c0_30 = arith.constant 0 : index
    %c1_31 = arith.constant 1 : index
    %c1_32 = arith.constant 1 : index
    %c0_33 = arith.constant 0 : index
    %20 = tpu.strided_load %arg3[%c0_30, %c1_31, %c1_32, %c0_33] {strides = array<i32: 1, 2, 2, 1>} : memref<2x18x18x64xf32, #tpu.memory_space<vmem>>, vector<2x8x8x64xf32>
    %21 = vector.shape_cast %20 : vector<2x8x8x64xf32> to vector<128x64xf32>
    %22 = arith.truncf %21 : vector<128x64xf32> to vector<128x64xbf16>
    %c0_34 = arith.constant 0 : index
    %c256 = arith.constant 256 : index
    %23 = vector.load %arg4[%c0_34, %c256] : memref<128x576xbf16, #tpu.memory_space<vmem>>, vector<128x64xbf16>
    tpu.vector_store %arg4[%c0_34, %c256], %22 {strides = array<i32>} : memref<128x576xbf16, #tpu.memory_space<vmem>>, vector<128x64xbf16>,
    %c0_35 = arith.constant 0 : index
    %c1_36 = arith.constant 1 : index
    %c2_37 = arith.constant 2 : index
    %c0_38 = arith.constant 0 : index
    %24 = tpu.strided_load %arg3[%c0_35, %c1_36, %c2_37, %c0_38] {strides = array<i32: 1, 2, 2, 1>} : memref<2x18x18x64xf32, #tpu.memory_space<vmem>>, vector<2x8x8x64xf32>
    %25 = vector.shape_cast %24 : vector<2x8x8x64xf32> to vector<128x64xf32>
    %26 = arith.truncf %25 : vector<128x64xf32> to vector<128x64xbf16>
    %c0_39 = arith.constant 0 : index
    %c320 = arith.constant 320 : index
    %27 = vector.load %arg4[%c0_39, %c320] : memref<128x576xbf16, #tpu.memory_space<vmem>>, vector<128x64xbf16>
    tpu.vector_store %arg4[%c0_39, %c320], %26 {strides = array<i32>} : memref<128x576xbf16, #tpu.memory_space<vmem>>, vector<128x64xbf16>,
    %c0_40 = arith.constant 0 : index
    %c2_41 = arith.constant 2 : index
    %c0_42 = arith.constant 0 : index
    %c0_43 = arith.constant 0 : index
    %28 = tpu.strided_load %arg3[%c0_40, %c2_41, %c0_42, %c0_43] {strides = array<i32: 1, 2, 2, 1>} : memref<2x18x18x64xf32, #tpu.memory_space<vmem>>, vector<2x8x8x64xf32>
    %29 = vector.shape_cast %28 : vector<2x8x8x64xf32> to vector<128x64xf32>
    %30 = arith.truncf %29 : vector<128x64xf32> to vector<128x64xbf16>
    %c0_44 = arith.constant 0 : index
    %c384 = arith.constant 384 : index
    %31 = vector.load %arg4[%c0_44, %c384] : memref<128x576xbf16, #tpu.memory_space<vmem>>, vector<128x64xbf16>
    tpu.vector_store %arg4[%c0_44, %c384], %30 {strides = array<i32>} : memref<128x576xbf16, #tpu.memory_space<vmem>>, vector<128x64xbf16>,
    %c0_45 = arith.constant 0 : index
    %c2_46 = arith.constant 2 : index
    %c1_47 = arith.constant 1 : index
    %c0_48 = arith.constant 0 : index
    %32 = tpu.strided_load %arg3[%c0_45, %c2_46, %c1_47, %c0_48] {strides = array<i32: 1, 2, 2, 1>} : memref<2x18x18x64xf32, #tpu.memory_space<vmem>>, vector<2x8x8x64xf32>
    %33 = vector.shape_cast %32 : vector<2x8x8x64xf32> to vector<128x64xf32>
    %34 = arith.truncf %33 : vector<128x64xf32> to vector<128x64xbf16>
    %c0_49 = arith.constant 0 : index
    %c448 = arith.constant 448 : index
    %35 = vector.load %arg4[%c0_49, %c448] : memref<128x576xbf16, #tpu.memory_space<vmem>>, vector<128x64xbf16>
    tpu.vector_store %arg4[%c0_49, %c448], %34 {strides = array<i32>} : memref<128x576xbf16, #tpu.memory_space<vmem>>, vector<128x64xbf16>,
    %c0_50 = arith.constant 0 : index
    %c2_51 = arith.constant 2 : index
    %c2_52 = arith.constant 2 : index
    %c0_53 = arith.constant 0 : index
    %36 = tpu.strided_load %arg3[%c0_50, %c2_51, %c2_52, %c0_53] {strides = array<i32: 1, 2, 2, 1>} : memref<2x18x18x64xf32, #tpu.memory_space<vmem>>, vector<2x8x8x64xf32>
    %37 = vector.shape_cast %36 : vector<2x8x8x64xf32> to vector<128x64xf32>
    %38 = arith.truncf %37 : vector<128x64xf32> to vector<128x64xbf16>
    %c0_54 = arith.constant 0 : index
    %c512 = arith.constant 512 : index
    %39 = vector.load %arg4[%c0_54, %c512] : memref<128x576xbf16, #tpu.memory_space<vmem>>, vector<128x64xbf16>
    tpu.vector_store %arg4[%c0_54, %c512], %38 {strides = array<i32>} : memref<128x576xbf16, #tpu.memory_space<vmem>>, vector<128x64xbf16>,
    %c0_55 = arith.constant 0 : index
    %c0_56 = arith.constant 0 : index
    %40 = vector.load %arg4[%c0_55, %c0_56] : memref<128x576xbf16, #tpu.memory_space<vmem>>, vector<128x576xbf16>
    %c0_57 = arith.constant 0 : index
    %c0_58 = arith.constant 0 : index
    %41 = vector.load %arg1[%c0_57, %c0_58] : memref<576x128xbf16, #tpu.memory_space<vmem>>, vector<576x128xbf16>
    %cst_59 = arith.constant dense<0.000000e+00> : vector<128x128xf32>
    %42 = tpu.matmul %40, %41, %cst_59 {dimension_numbers = #tpu.dot_dimension_numbers<[1], [0], [0], [1], [0, 0, 1, 1], [], []>} : vector<128x576xbf16>, vector<576x128xbf16>, vector<128x128xf32> -> vector<128x128xf32>
    %43 = vector.shape_cast %42 : vector<128x128xf32> to vector<2x8x8x128xf32>
    %c0_60 = arith.constant 0 : index
    %c0_61 = arith.constant 0 : index
    %c0_62 = arith.constant 0 : index
    %c0_63 = arith.constant 0 : index
    %44 = vector.load %arg2[%c0_60, %c0_61, %c0_62, %c0_63] : memref<2x8x8x128xf32, #tpu.memory_space<vmem>>, vector<2x8x8x128xf32>
    tpu.vector_store %arg2[%c0_60, %c0_61, %c0_62, %c0_63], %43 {strides = array<i32>} : memref<2x8x8x128xf32, #tpu.memory_space<vmem>>, vector<2x8x8x128xf32>,
    return
  }
}

</mosaic_0001>

<llo_original>
// kernel: simplenet_forward.1
$region0: #{simplenet_forward.1}
  #allocation0 [shape = 'u32[]', space=smem, size = 0x4, offset = 0x4, fixed_abs, tag = 'smem constant byte address 0x4 - core index']
  #allocation1 [shape = 'u32[144,128]{1,0:T(1,128)}', space=vmem, size = 0x12000, scoped, tag = 'internal scratch']
  #allocation2 [shape = 'f32[2,18,18,64]{3,2,1,0:T(8,128)}', space=vmem, size = 0x6c000, scoped, tag = 'scratch operand']
  #allocation3 [shape = 'bf16[128,576]{1,0:T(8,128)(2,1)}', space=vmem, size = 0x28000, scoped, tag = 'scratch operand']
  %s0 = inlined_call_operand.hbm [shape: f32[2,16,16,64], index: 0, kind: input, shape index: {}]
  %s1 = inlined_call_operand.hbm [shape: bf16[576,128], index: 1, kind: input, shape index: {}]
  %s2 = inlined_call_operand.hbm [shape: f32[2,8,8,128], index: 2, kind: output, shape index: {}]
  %s3 = sld [smem:[#allocation0]]
  $region26: #{simplenet_forward.1} parent=0
    _
  %s5 = ssub.s32 1, %s3
  %s6 = scalar_select 0, %s5, %s3
  $region1: #{simplenet_forward.1} parent=0
    #allocation4 [shape = 'u8[262144]{0}', space=vmem, size = 0x40000, scoped, tag = 'input window, operand 0, single buffered']
    #allocation5 [shape = 's32[1]{0}', space=sflag, size = 0x4, scoped, tag = 'scoped memory for simplenet_forward.1']
    #allocation6 [shape = 's32[1]{0}', space=sflag, size = 0x4, scoped, tag = 'scoped memory for simplenet_forward.1']
    #allocation7 [shape = 'u8[147456]{0}', space=vmem, size = 0x24000, scoped, tag = 'input window, operand 1, single buffered']
    #allocation8 [shape = 's32[1]{0}', space=sflag, size = 0x4, scoped, tag = 'scoped memory for simplenet_forward.1']
    #allocation9 [shape = 'u8[65536]{0}', space=vmem, size = 0x10000, scoped, tag = 'output window, operand 0, single buffered']
    %7 = vsyncpa [#allocation5], 0
    %8 = vsyncpa [#allocation8], 0
    %9 = vsyncpa [#allocation6], 0
    // Predicated region
    $region2: #{simplenet_forward.1} parent=1 // pred_check
      _
    $region3: #{simplenet_forward.1} parent=1 // pred_check_branch
      %11 = sbr.rel (0) target = $region5
    $region4: #{simplenet_forward.1} parent=1 // pred_region
      %s13 = ssub.s32 8192, 8192
      %14 = vsyncadd [#allocation5], %s13
      %s15 = sshll.u32 [#allocation4], 4
      %s16 = int_to_ptr.vmem [resolvable:$true] %s15
      %21 = dma.hbm_to_vmem [thread:$0]  %s0, 8192, %s16, [#allocation5], 128, 128, 8
    $region5: #{simplenet_forward.1} parent=1 // pred_fallthru
      _
    // Predicated region
    $region6: #{simplenet_forward.1} parent=1 // pred_check
      _
    $region7: #{simplenet_forward.1} parent=1 // pred_check_branch
      %23 = sbr.rel (0) target = $region9
    $region8: #{simplenet_forward.1} parent=1 // pred_region
      %s25 = ssub.s32 4608, 4608
      %26 = vsyncadd [#allocation8], %s25
      %s27 = sshll.u32 [#allocation7], 4
      %s28 = int_to_ptr.vmem [resolvable:$true] %s27
      %33 = dma.hbm_to_vmem [thread:$0]  %s1, 4608, %s28, [#allocation8], 64, 64, 4
    $region9: #{simplenet_forward.1} parent=1 // pred_fallthru
      _
    // Predicated region
    $region10: #{simplenet_forward.1} parent=1 // pred_check
      _
    $region11: #{simplenet_forward.1} parent=1 // pred_check_branch
      %35 = sbr.rel (0) target = $region13
    $region12: #{simplenet_forward.1} parent=1 // pred_region
      %36 = dma.done [#allocation5], 8192
    $region13: #{simplenet_forward.1} parent=1 // pred_fallthru
      _
    // Predicated region
    $region14: #{simplenet_forward.1} parent=1 // pred_check
      _
    $region15: #{simplenet_forward.1} parent=1 // pred_check_branch
      %38 = sbr.rel (0) target = $region17
    $region16: #{simplenet_forward.1} parent=1 // pred_region
      %39 = dma.done [#allocation8], 4608
    $region17: #{simplenet_forward.1} parent=1 // pred_fallthru
      _
    %vm41 = vcmask 523264
    %42 = vst.msk [vmem:[#allocation2] sm:$0xff] %vm41, 0.0
    %43 = vst.msk [vmem:[#allocation2 + $0x8] sm:$0xff] %vm41, 0.0
    %vm44 = vcmask 517120
    %45 = vst.msk [vmem:[#allocation2 + $0x10] sm:$0x3] %vm44, 0.0
    %46 = vst.msk [vmem:[#allocation2 + $0x18] sm:$0xff] %vm41, 0.0
    %47 = vst.msk [vmem:[#allocation2 + $0x20] sm:$0xff] %vm41, 0.0
    %48 = vst.msk [vmem:[#allocation2 + $0x28] sm:$0x3] %vm44, 0.0
    %49 = vst.msk [vmem:[#allocation2 + $0x30] sm:$0xff] %vm41, 0.0
    %50 = vst.msk [vmem:[#allocation2 + $0x38] sm:$0xff] %vm41, 0.0
    %51 = vst.msk [vmem:[#allocation2 + $0x40] sm:$0x3] %vm44, 0.0
    %52 = vst.msk [vmem:[#allocation2 + $0x48] sm:$0xff] %vm41, 0.0
    %53 = vst.msk [vmem:[#allocation2 + $0x50] sm:$0xff] %vm41, 0.0
    %54 = vst.msk [vmem:[#allocation2 + $0x58] sm:$0x3] %vm44, 0.0
    %55 = vst.msk [vmem:[#allocation2 + $0x60] sm:$0xff] %vm41, 0.0
    %56 = vst.msk [vmem:[#allocation2 + $0x68] sm:$0xff] %vm41, 0.0
    %57 = vst.msk [vmem:[#allocation2 + $0x70] sm:$0x3] %vm44, 0.0
    %58 = vst.msk [vmem:[#allocation2 + $0x78] sm:$0xff] %vm41, 0.0
    %59 = vst.msk [vmem:[#allocation2 + $0x80] sm:$0xff] %vm41, 0.0
    %60 = vst.msk [vmem:[#allocation2 + $0x88] sm:$0x3] %vm44, 0.0
    %61 = vst.msk [vmem:[#allocation2 + $0x90] sm:$0xff] %vm41, 0.0
    %62 = vst.msk [vmem:[#allocation2 + $0x98] sm:$0xff] %vm41, 0.0
    %63 = vst.msk [vmem:[#allocation2 + $0xa0] sm:$0x3] %vm44, 0.0
    %64 = vst.msk [vmem:[#allocation2 + $0xa8] sm:$0xff] %vm41, 0.0
    %65 = vst.msk [vmem:[#allocation2 + $0xb0] sm:$0xff] %vm41, 0.0
    %66 = vst.msk [vmem:[#allocation2 + $0xb8] sm:$0x3] %vm44, 0.0
    %67 = vst.msk [vmem:[#allocation2 + $0xc0] sm:$0xff] %vm41, 0.0
    %68 = vst.msk [vmem:[#allocation2 + $0xc8] sm:$0xff] %vm41, 0.0
    %69 = vst.msk [vmem:[#allocation2 + $0xd0] sm:$0x3] %vm44, 0.0
    %70 = vst.msk [vmem:[#allocation2 + $0xd8] sm:$0xff] %vm41, 0.0
    %71 = vst.msk [vmem:[#allocation2 + $0xe0] sm:$0xff] %vm41, 0.0
    %72 = vst.msk [vmem:[#allocation2 + $0xe8] sm:$0x3] %vm44, 0.0
    %73 = vst.msk [vmem:[#allocation2 + $0xf0] sm:$0xff] %vm41, 0.0
    %74 = vst.msk [vmem:[#allocation2 + $0xf8] sm:$0xff] %vm41, 0.0
    %75 = vst.msk [vmem:[#allocation2 + $0x100] sm:$0x3] %vm44, 0.0
    %76 = vst.msk [vmem:[#allocation2 + $0x108] sm:$0xff] %vm41, 0.0
    %77 = vst.msk [vmem:[#allocation2 + $0x110] sm:$0xff] %vm41, 0.0
    %78 = vst.msk [vmem:[#allocation2 + $0x118] sm:$0x3] %vm44, 0.0
    %79 = vst.msk [vmem:[#allocation2 + $0x120] sm:$0xff] %vm41, 0.0
    %80 = vst.msk [vmem:[#allocation2 + $0x128] sm:$0xff] %vm41, 0.0
    %81 = vst.msk [vmem:[#allocation2 + $0x130] sm:$0x3] %vm44, 0.0
    %82 = vst.msk [vmem:[#allocation2 + $0x138] sm:$0xff] %vm41, 0.0
    %83 = vst.msk [vmem:[#allocation2 + $0x140] sm:$0xff] %vm41, 0.0
    %84 = vst.msk [vmem:[#allocation2 + $0x148] sm:$0x3] %vm44, 0.0
    %85 = vst.msk [vmem:[#allocation2 + $0x150] sm:$0xff] %vm41, 0.0
    %86 = vst.msk [vmem:[#allocation2 + $0x158] sm:$0xff] %vm41, 0.0
    %87 = vst.msk [vmem:[#allocation2 + $0x160] sm:$0x3] %vm44, 0.0
    %88 = vst.msk [vmem:[#allocation2 + $0x168] sm:$0xff] %vm41, 0.0
    %89 = vst.msk [vmem:[#allocation2 + $0x170] sm:$0xff] %vm41, 0.0
    %90 = vst.msk [vmem:[#allocation2 + $0x178] sm:$0x3] %vm44, 0.0
    %91 = vst.msk [vmem:[#allocation2 + $0x180] sm:$0xff] %vm41, 0.0
    %92 = vst.msk [vmem:[#allocation2 + $0x188] sm:$0xff] %vm41, 0.0
    %93 = vst.msk [vmem:[#allocation2 + $0x190] sm:$0x3] %vm44, 0.0
    %94 = vst.msk [vmem:[#allocation2 + $0x198] sm:$0xff] %vm41, 0.0
    %95 = vst.msk [vmem:[#allocation2 + $0x1a0] sm:$0xff] %vm41, 0.0
    %96 = vst.msk [vmem:[#allocation2 + $0x1a8] sm:$0x3] %vm44, 0.0
    %97 = vst.msk [vmem:[#allocation2 + $0x1b0] sm:$0xff] %vm41, 0.0
    %98 = vst.msk [vmem:[#allocation2 + $0x1b8] sm:$0xff] %vm41, 0.0
    %99 = vst.msk [vmem:[#allocation2 + $0x1c0] sm:$0x3] %vm44, 0.0
    %100 = vst.msk [vmem:[#allocation2 + $0x1c8] sm:$0xff] %vm41, 0.0
    %101 = vst.msk [vmem:[#allocation2 + $0x1d0] sm:$0xff] %vm41, 0.0
    %102 = vst.msk [vmem:[#allocation2 + $0x1d8] sm:$0x3] %vm44, 0.0
    %103 = vst.msk [vmem:[#allocation2 + $0x1e0] sm:$0xff] %vm41, 0.0
    %104 = vst.msk [vmem:[#allocation2 + $0x1e8] sm:$0xff] %vm41, 0.0
    %105 = vst.msk [vmem:[#allocation2 + $0x1f0] sm:$0x3] %vm44, 0.0
    %106 = vst.msk [vmem:[#allocation2 + $0x1f8] sm:$0xff] %vm41, 0.0
    %107 = vst.msk [vmem:[#allocation2 + $0x200] sm:$0xff] %vm41, 0.0
    %108 = vst.msk [vmem:[#allocation2 + $0x208] sm:$0x3] %vm44, 0.0
    %109 = vst.msk [vmem:[#allocation2 + $0x210] sm:$0xff] %vm41, 0.0
    %110 = vst.msk [vmem:[#allocation2 + $0x218] sm:$0xff] %vm41, 0.0
    %111 = vst.msk [vmem:[#allocation2 + $0x220] sm:$0x3] %vm44, 0.0
    %112 = vst.msk [vmem:[#allocation2 + $0x228] sm:$0xff] %vm41, 0.0
    %113 = vst.msk [vmem:[#allocation2 + $0x230] sm:$0xff] %vm41, 0.0
    %114 = vst.msk [vmem:[#allocation2 + $0x238] sm:$0x3] %vm44, 0.0
    %115 = vst.msk [vmem:[#allocation2 + $0x240] sm:$0xff] %vm41, 0.0
    %116 = vst.msk [vmem:[#allocation2 + $0x248] sm:$0xff] %vm41, 0.0
    %117 = vst.msk [vmem:[#allocation2 + $0x250] sm:$0x3] %vm44, 0.0
    %118 = vst.msk [vmem:[#allocation2 + $0x258] sm:$0xff] %vm41, 0.0
    %119 = vst.msk [vmem:[#allocation2 + $0x260] sm:$0xff] %vm41, 0.0
    %120 = vst.msk [vmem:[#allocation2 + $0x268] sm:$0x3] %vm44, 0.0
    %121 = vst.msk [vmem:[#allocation2 + $0x270] sm:$0xff] %vm41, 0.0
    %122 = vst.msk [vmem:[#allocation2 + $0x278] sm:$0xff] %vm41, 0.0
    %123 = vst.msk [vmem:[#allocation2 + $0x280] sm:$0x3] %vm44, 0.0
    %124 = vst.msk [vmem:[#allocation2 + $0x288] sm:$0xff] %vm41, 0.0
    %125 = vst.msk [vmem:[#allocation2 + $0x290] sm:$0xff] %vm41, 0.0
    %126 = vst.msk [vmem:[#allocation2 + $0x298] sm:$0x3] %vm44, 0.0
    %127 = vst.msk [vmem:[#allocation2 + $0x2a0] sm:$0xff] %vm41, 0.0
    %128 = vst.msk [vmem:[#allocation2 + $0x2a8] sm:$0xff] %vm41, 0.0
    %129 = vst.msk [vmem:[#allocation2 + $0x2b0] sm:$0x3] %vm44, 0.0
    %130 = vst.msk [vmem:[#allocation2 + $0x2b8] sm:$0xff] %vm41, 0.0
    %131 = vst.msk [vmem:[#allocation2 + $0x2c0] sm:$0xff] %vm41, 0.0
    %132 = vst.msk [vmem:[#allocation2 + $0x2c8] sm:$0x3] %vm44, 0.0
    %133 = vst.msk [vmem:[#allocation2 + $0x2d0] sm:$0xff] %vm41, 0.0
    %134 = vst.msk [vmem:[#allocation2 + $0x2d8] sm:$0xff] %vm41, 0.0
    %135 = vst.msk [vmem:[#allocation2 + $0x2e0] sm:$0x3] %vm44, 0.0
    %136 = vst.msk [vmem:[#allocation2 + $0x2e8] sm:$0xff] %vm41, 0.0
    %137 = vst.msk [vmem:[#allocation2 + $0x2f0] sm:$0xff] %vm41, 0.0
    %138 = vst.msk [vmem:[#allocation2 + $0x2f8] sm:$0x3] %vm44, 0.0
    %139 = vst.msk [vmem:[#allocation2 + $0x300] sm:$0xff] %vm41, 0.0
    %140 = vst.msk [vmem:[#allocation2 + $0x308] sm:$0xff] %vm41, 0.0
    %141 = vst.msk [vmem:[#allocation2 + $0x310] sm:$0x3] %vm44, 0.0
    %142 = vst.msk [vmem:[#allocation2 + $0x318] sm:$0xff] %vm41, 0.0
    %143 = vst.msk [vmem:[#allocation2 + $0x320] sm:$0xff] %vm41, 0.0
    %144 = vst.msk [vmem:[#allocation2 + $0x328] sm:$0x3] %vm44, 0.0
    %145 = vst.msk [vmem:[#allocation2 + $0x330] sm:$0xff] %vm41, 0.0
    %146 = vst.msk [vmem:[#allocation2 + $0x338] sm:$0xff] %vm41, 0.0
    %147 = vst.msk [vmem:[#allocation2 + $0x340] sm:$0x3] %vm44, 0.0
    %148 = vst.msk [vmem:[#allocation2 + $0x348] sm:$0xff] %vm41, 0.0
    %149 = vst.msk [vmem:[#allocation2 + $0x350] sm:$0xff] %vm41, 0.0
    %150 = vst.msk [vmem:[#allocation2 + $0x358] sm:$0x3] %vm44, 0.0
    %v151 = vld [vmem:[#allocation4] sm:$0xff]
    %v152 = vld [vmem:[#allocation4 + $0x8] sm:$0xff]
    %v153 = vld [vmem:[#allocation4 + $0x10] sm:$0xff]
    %v154 = vld [vmem:[#allocation4 + $0x18] sm:$0xff]
    %v155 = vld [vmem:[#allocation4 + $0x20] sm:$0xff]
    %v156 = vld [vmem:[#allocation4 + $0x28] sm:$0xff]
    %v157 = vld [vmem:[#allocation4 + $0x30] sm:$0xff]
    %v158 = vld [vmem:[#allocation4 + $0x38] sm:$0xff]
    %v159 = vld [vmem:[#allocation4 + $0x40] sm:$0xff]
    %v160 = vld [vmem:[#allocation4 + $0x48] sm:$0xff]
    %v161 = vld [vmem:[#allocation4 + $0x50] sm:$0xff]
    %v162 = vld [vmem:[#allocation4 + $0x58] sm:$0xff]
    %v163 = vld [vmem:[#allocation4 + $0x60] sm:$0xff]
    %v164 = vld [vmem:[#allocation4 + $0x68] sm:$0xff]
    %v165 = vld [vmem:[#allocation4 + $0x70] sm:$0xff]
    %v166 = vld [vmem:[#allocation4 + $0x78] sm:$0xff]
    %v167 = vld [vmem:[#allocation4 + $0x80] sm:$0xff]
    %v168 = vld [vmem:[#allocation4 + $0x88] sm:$0xff]
    %v169 = vld [vmem:[#allocation4 + $0x90] sm:$0xff]
    %v170 = vld [vmem:[#allocation4 + $0x98] sm:$0xff]
    %v171 = vld [vmem:[#allocation4 + $0xa0] sm:$0xff]
    %v172 = vld [vmem:[#allocation4 + $0xa8] sm:$0xff]
    %v173 = vld [vmem:[#allocation4 + $0xb0] sm:$0xff]
    %v174 = vld [vmem:[#allocation4 + $0xb8] sm:$0xff]
    %v175 = vld [vmem:[#allocation4 + $0xc0] sm:$0xff]
    %v176 = vld [vmem:[#allocation4 + $0xc8] sm:$0xff]
    %v177 = vld [vmem:[#allocation4 + $0xd0] sm:$0xff]
    %v178 = vld [vmem:[#allocation4 + $0xd8] sm:$0xff]
    %v179 = vld [vmem:[#allocation4 + $0xe0] sm:$0xff]
    %v180 = vld [vmem:[#allocation4 + $0xe8] sm:$0xff]
    %v181 = vld [vmem:[#allocation4 + $0xf0] sm:$0xff]
    %v182 = vld [vmem:[#allocation4 + $0xf8] sm:$0xff]
    %v183 = vld [vmem:[#allocation4 + $0x100] sm:$0xff]
    %v184 = vld [vmem:[#allocation4 + $0x108] sm:$0xff]
    %v185 = vld [vmem:[#allocation4 + $0x110] sm:$0xff]
    %v186 = vld [vmem:[#allocation4 + $0x118] sm:$0xff]
    %v187 = vld [vmem:[#allocation4 + $0x120] sm:$0xff]
    %v188 = vld [vmem:[#allocation4 + $0x128] sm:$0xff]
    %v189 = vld [vmem:[#allocation4 + $0x130] sm:$0xff]
    %v190 = vld [vmem:[#allocation4 + $0x138] sm:$0xff]
    %v191 = vld [vmem:[#allocation4 + $0x140] sm:$0xff]
    %v192 = vld [vmem:[#allocation4 + $0x148] sm:$0xff]
    %v193 = vld [vmem:[#allocation4 + $0x150] sm:$0xff]
    %v194 = vld [vmem:[#allocation4 + $0x158] sm:$0xff]
    %v195 = vld [vmem:[#allocation4 + $0x160] sm:$0xff]
    %v196 = vld [vmem:[#allocation4 + $0x168] sm:$0xff]
    %v197 = vld [vmem:[#allocation4 + $0x170] sm:$0xff]
    %v198 = vld [vmem:[#allocation4 + $0x178] sm:$0xff]
    %v199 = vld [vmem:[#allocation4 + $0x180] sm:$0xff]
    %v200 = vld [vmem:[#allocation4 + $0x188] sm:$0xff]
    %v201 = vld [vmem:[#allocation4 + $0x190] sm:$0xff]
    %v202 = vld [vmem:[#allocation4 + $0x198] sm:$0xff]
    %v203 = vld [vmem:[#allocation4 + $0x1a0] sm:$0xff]
    %v204 = vld [vmem:[#allocation4 + $0x1a8] sm:$0xff]
    %v205 = vld [vmem:[#allocation4 + $0x1b0] sm:$0xff]
    %v206 = vld [vmem:[#allocation4 + $0x1b8] sm:$0xff]
    %v207 = vld [vmem:[#allocation4 + $0x1c0] sm:$0xff]
    %v208 = vld [vmem:[#allocation4 + $0x1c8] sm:$0xff]
    %v209 = vld [vmem:[#allocation4 + $0x1d0] sm:$0xff]
    %v210 = vld [vmem:[#allocation4 + $0x1d8] sm:$0xff]
    %v211 = vld [vmem:[#allocation4 + $0x1e0] sm:$0xff]
    %v212 = vld [vmem:[#allocation4 + $0x1e8] sm:$0xff]
    %v213 = vld [vmem:[#allocation4 + $0x1f0] sm:$0xff]
    %v214 = vld [vmem:[#allocation4 + $0x1f8] sm:$0xff]
    %s215 = scalar_lea.vmem [#allocation2], 24
    %216 = vst.msk [vmem:[%s215 + $0x1] sm:$0xff] %vm41, %v151
    %217 = vst.msk [vmem:[%s215 + $0x9] sm:$0xff] %vm41, %v152
    %218 = vst.msk [vmem:[%s215 + $0x19] sm:$0xff] %vm41, %v153
    %219 = vst.msk [vmem:[%s215 + $0x21] sm:$0xff] %vm41, %v154
    %220 = vst.msk [vmem:[%s215 + $0x31] sm:$0xff] %vm41, %v155
    %221 = vst.msk [vmem:[%s215 + $0x39] sm:$0xff] %vm41, %v156
    %222 = vst.msk [vmem:[%s215 + $0x49] sm:$0xff] %vm41, %v157
    %223 = vst.msk [vmem:[%s215 + $0x51] sm:$0xff] %vm41, %v158
    %224 = vst.msk [vmem:[%s215 + $0x61] sm:$0xff] %vm41, %v159
    %225 = vst.msk [vmem:[%s215 + $0x69] sm:$0xff] %vm41, %v160
    %226 = vst.msk [vmem:[%s215 + $0x79] sm:$0xff] %vm41, %v161
    %227 = vst.msk [vmem:[%s215 + $0x81] sm:$0xff] %vm41, %v162
    %228 = vst.msk [vmem:[%s215 + $0x91] sm:$0xff] %vm41, %v163
    %229 = vst.msk [vmem:[%s215 + $0x99] sm:$0xff] %vm41, %v164
    %230 = vst.msk [vmem:[%s215 + $0xa9] sm:$0xff] %vm41, %v165
    %231 = vst.msk [vmem:[%s215 + $0xb1] sm:$0xff] %vm41, %v166
    %232 = vst.msk [vmem:[%s215 + $0xc1] sm:$0xff] %vm41, %v167
    %233 = vst.msk [vmem:[%s215 + $0xc9] sm:$0xff] %vm41, %v168
    %234 = vst.msk [vmem:[%s215 + $0xd9] sm:$0xff] %vm41, %v169
    %235 = vst.msk [vmem:[%s215 + $0xe1] sm:$0xff] %vm41, %v170
    %236 = vst.msk [vmem:[%s215 + $0xf1] sm:$0xff] %vm41, %v171
    %237 = vst.msk [vmem:[%s215 + $0xf9] sm:$0xff] %vm41, %v172
    %238 = vst.msk [vmem:[%s215 + $0x109] sm:$0xff] %vm41, %v173
    %239 = vst.msk [vmem:[%s215 + $0x111] sm:$0xff] %vm41, %v174
    %240 = vst.msk [vmem:[%s215 + $0x121] sm:$0xff] %vm41, %v175
    %241 = vst.msk [vmem:[%s215 + $0x129] sm:$0xff] %vm41, %v176
    %242 = vst.msk [vmem:[%s215 + $0x139] sm:$0xff] %vm41, %v177
    %243 = vst.msk [vmem:[%s215 + $0x141] sm:$0xff] %vm41, %v178
    %244 = vst.msk [vmem:[%s215 + $0x151] sm:$0xff] %vm41, %v179
    %245 = vst.msk [vmem:[%s215 + $0x159] sm:$0xff] %vm41, %v180
    %246 = vst.msk [vmem:[%s215 + $0x169] sm:$0xff] %vm41, %v181
    %247 = vst.msk [vmem:[%s215 + $0x171] sm:$0xff] %vm41, %v182
    %248 = vst.msk [vmem:[%s215 + $0x1b1] sm:$0xff] %vm41, %v183
    %249 = vst.msk [vmem:[%s215 + $0x1b9] sm:$0xff] %vm41, %v184
    %250 = vst.msk [vmem:[%s215 + $0x1c9] sm:$0xff] %vm41, %v185
    %251 = vst.msk [vmem:[%s215 + $0x1d1] sm:$0xff] %vm41, %v186
    %252 = vst.msk [vmem:[%s215 + $0x1e1] sm:$0xff] %vm41, %v187
    %253 = vst.msk [vmem:[%s215 + $0x1e9] sm:$0xff] %vm41, %v188
    %254 = vst.msk [vmem:[%s215 + $0x1f9] sm:$0xff] %vm41, %v189
    %255 = vst.msk [vmem:[%s215 + $0x201] sm:$0xff] %vm41, %v190
    %256 = vst.msk [vmem:[%s215 + $0x211] sm:$0xff] %vm41, %v191
    %257 = vst.msk [vmem:[%s215 + $0x219] sm:$0xff] %vm41, %v192
    %258 = vst.msk [vmem:[%s215 + $0x229] sm:$0xff] %vm41, %v193
    %259 = vst.msk [vmem:[%s215 + $0x231] sm:$0xff] %vm41, %v194
    %260 = vst.msk [vmem:[%s215 + $0x241] sm:$0xff] %vm41, %v195
    %261 = vst.msk [vmem:[%s215 + $0x249] sm:$0xff] %vm41, %v196
    %262 = vst.msk [vmem:[%s215 + $0x259] sm:$0xff] %vm41, %v197
    %263 = vst.msk [vmem:[%s215 + $0x261] sm:$0xff] %vm41, %v198
    %264 = vst.msk [vmem:[%s215 + $0x271] sm:$0xff] %vm41, %v199
    %265 = vst.msk [vmem:[%s215 + $0x279] sm:$0xff] %vm41, %v200
    %266 = vst.msk [vmem:[%s215 + $0x289] sm:$0xff] %vm41, %v201
    %267 = vst.msk [vmem:[%s215 + $0x291] sm:$0xff] %vm41, %v202
    %268 = vst.msk [vmem:[%s215 + $0x2a1] sm:$0xff] %vm41, %v203
    %269 = vst.msk [vmem:[%s215 + $0x2a9] sm:$0xff] %vm41, %v204
    %270 = vst.msk [vmem:[%s215 + $0x2b9] sm:$0xff] %vm41, %v205
    %271 = vst.msk [vmem:[%s215 + $0x2c1] sm:$0xff] %vm41, %v206
    %272 = vst.msk [vmem:[%s215 + $0x2d1] sm:$0xff] %vm41, %v207
    %273 = vst.msk [vmem:[%s215 + $0x2d9] sm:$0xff] %vm41, %v208
    %274 = vst.msk [vmem:[%s215 + $0x2e9] sm:$0xff] %vm41, %v209
    %275 = vst.msk [vmem:[%s215 + $0x2f1] sm:$0xff] %vm41, %v210
    %276 = vst.msk [vmem:[%s215 + $0x301] sm:$0xff] %vm41, %v211
    %277 = vst.msk [vmem:[%s215 + $0x309] sm:$0xff] %vm41, %v212
    %278 = vst.msk [vmem:[%s215 + $0x319] sm:$0xff] %vm41, %v213
    %279 = vst.msk [vmem:[%s215 + $0x321] sm:$0xff] %vm41, %v214
    %v280 = vld [vmem:[#allocation2] ss:$2 sm:$0xff]
    %s281 = scalar_lea.vmem [#allocation2], 48
    %v282 = vld [vmem:[%s281] ss:$2 sm:$0xff]
    %s283 = scalar_lea.vmem [#allocation2], 96
    %v284 = vld [vmem:[%s283] ss:$2 sm:$0xff]
    %s285 = scalar_lea.vmem [#allocation2], 144
    %v286 = vld [vmem:[%s285] ss:$2 sm:$0xff]
    %s287 = scalar_lea.vmem [#allocation2], 192
    %v288 = vld [vmem:[%s287] ss:$2 sm:$0xff]
    %s289 = scalar_lea.vmem [#allocation2], 240
    %v290 = vld [vmem:[%s289] ss:$2 sm:$0xff]
    %s291 = scalar_lea.vmem [#allocation2], 288
    %v292 = vld [vmem:[%s291] ss:$2 sm:$0xff]
    %s293 = scalar_lea.vmem [#allocation2], 336
    %v294 = vld [vmem:[%s293] ss:$2 sm:$0xff]
    %s295 = scalar_lea.vmem [#allocation2], 432
    %v296 = vld [vmem:[%s295] ss:$2 sm:$0xff]
    %s297 = scalar_lea.vmem [#allocation2], 480
    %v298 = vld [vmem:[%s297] ss:$2 sm:$0xff]
    %s299 = scalar_lea.vmem [#allocation2], 528
    %v300 = vld [vmem:[%s299] ss:$2 sm:$0xff]
    %s301 = scalar_lea.vmem [#allocation2], 576
    %v302 = vld [vmem:[%s301] ss:$2 sm:$0xff]
    %s303 = scalar_lea.vmem [#allocation2], 624
    %v304 = vld [vmem:[%s303] ss:$2 sm:$0xff]
    %s305 = scalar_lea.vmem [#allocation2], 672
    %v306 = vld [vmem:[%s305] ss:$2 sm:$0xff]
    %s307 = scalar_lea.vmem [#allocation2], 720
    %v308 = vld [vmem:[%s307] ss:$2 sm:$0xff]
    %s309 = scalar_lea.vmem [#allocation2], 768
    %v310 = vld [vmem:[%s309] ss:$2 sm:$0xff]
    %v311 = vpack.c.bf16 %v282, %v280
    %v312 = vpack.c.bf16 %v286, %v284
    %v313 = vpack.c.bf16 %v290, %v288
    %v314 = vpack.c.bf16 %v294, %v292
    %v315 = vpack.c.bf16 %v298, %v296
    %v316 = vpack.c.bf16 %v302, %v300
    %v317 = vpack.c.bf16 %v306, %v304
    %v318 = vpack.c.bf16 %v310, %v308
    %v327 = vunpack.c.l.b16 %v311
    %v328 = vunpack.c.h.b16 %v311
    %v329 = vunpack.c.l.b16 %v312
    %v330 = vunpack.c.h.b16 %v312
    %v331 = vunpack.c.l.b16 %v313
    %v332 = vunpack.c.h.b16 %v313
    %v333 = vunpack.c.l.b16 %v314
    %v334 = vunpack.c.h.b16 %v314
    %v335 = vunpack.c.l.b16 %v315
    %v336 = vunpack.c.h.b16 %v315
    %v337 = vunpack.c.l.b16 %v316
    %v338 = vunpack.c.h.b16 %v316
    %v339 = vunpack.c.l.b16 %v317
    %v340 = vunpack.c.h.b16 %v317
    %v341 = vunpack.c.l.b16 %v318
    %v342 = vunpack.c.h.b16 %v318
    %v343 = vpack.c.b16 %v327, %v327
    %v344 = vpack.c.b16 %v328, %v328
    %v345 = vpack.c.b16 %v329, %v329
    %v346 = vpack.c.b16 %v330, %v330
    %v347 = vpack.c.b16 %v331, %v331
    %v348 = vpack.c.b16 %v332, %v332
    %v349 = vpack.c.b16 %v333, %v333
    %v350 = vpack.c.b16 %v334, %v334
    %v351 = vpack.c.b16 %v335, %v335
    %v352 = vpack.c.b16 %v336, %v336
    %v353 = vpack.c.b16 %v337, %v337
    %v354 = vpack.c.b16 %v338, %v338
    %v355 = vpack.c.b16 %v339, %v339
    %v356 = vpack.c.b16 %v340, %v340
    %v357 = vpack.c.b16 %v341, %v341
    %v358 = vpack.c.b16 %v342, %v342
    %vm375 = vcmask 519168
    %376 = vst.msk [vmem:[#allocation3] sm:$0xf] %vm375, %v343
    %377 = vst.msk [vmem:[#allocation3 + $0x14] sm:$0xf] %vm375, %v344
    %378 = vst.msk [vmem:[#allocation3 + $0x28] sm:$0xf] %vm375, %v345
    %379 = vst.msk [vmem:[#allocation3 + $0x3c] sm:$0xf] %vm375, %v346
    %380 = vst.msk [vmem:[#allocation3 + $0x50] sm:$0xf] %vm375, %v347
    %381 = vst.msk [vmem:[#allocation3 + $0x64] sm:$0xf] %vm375, %v348
    %382 = vst.msk [vmem:[#allocation3 + $0x78] sm:$0xf] %vm375, %v349
    %383 = vst.msk [vmem:[#allocation3 + $0x8c] sm:$0xf] %vm375, %v350
    %384 = vst.msk [vmem:[#allocation3 + $0xa0] sm:$0xf] %vm375, %v351
    %385 = vst.msk [vmem:[#allocation3 + $0xb4] sm:$0xf] %vm375, %v352
    %386 = vst.msk [vmem:[#allocation3 + $0xc8] sm:$0xf] %vm375, %v353
    %387 = vst.msk [vmem:[#allocation3 + $0xdc] sm:$0xf] %vm375, %v354
    %388 = vst.msk [vmem:[#allocation3 + $0xf0] sm:$0xf] %vm375, %v355
    %389 = vst.msk [vmem:[#allocation3 + $0x104] sm:$0xf] %vm375, %v356
    %390 = vst.msk [vmem:[#allocation3 + $0x118] sm:$0xf] %vm375, %v357
    %391 = vst.msk [vmem:[#allocation3 + $0x12c] sm:$0xf] %vm375, %v358
    %s392 = scalar_lea.vmem [#allocation2], 1
    %v393 = vld [vmem:[%s392] ss:$2 sm:$0xff]
    %s394 = scalar_lea.vmem [#allocation2], 49
    %v395 = vld [vmem:[%s394] ss:$2 sm:$0xff]
    %s396 = scalar_lea.vmem [#allocation2], 97
    %v397 = vld [vmem:[%s396] ss:$2 sm:$0xff]
    %s398 = scalar_lea.vmem [#allocation2], 145
    %v399 = vld [vmem:[%s398] ss:$2 sm:$0xff]
    %s400 = scalar_lea.vmem [#allocation2], 193
    %v401 = vld [vmem:[%s400] ss:$2 sm:$0xff]
    %s402 = scalar_lea.vmem [#allocation2], 241
    %v403 = vld [vmem:[%s402] ss:$2 sm:$0xff]
    %s404 = scalar_lea.vmem [#allocation2], 289
    %v405 = vld [vmem:[%s404] ss:$2 sm:$0xff]
    %s406 = scalar_lea.vmem [#allocation2], 337
    %v407 = vld [vmem:[%s406] ss:$2 sm:$0xff]
    %s408 = scalar_lea.vmem [#allocation2], 433
    %v409 = vld [vmem:[%s408] ss:$2 sm:$0xff]
    %s410 = scalar_lea.vmem [#allocation2], 481
    %v411 = vld [vmem:[%s410] ss:$2 sm:$0xff]
    %s412 = scalar_lea.vmem [#allocation2], 529
    %v413 = vld [vmem:[%s412] ss:$2 sm:$0xff]
    %s414 = scalar_lea.vmem [#allocation2], 577
    %v415 = vld [vmem:[%s414] ss:$2 sm:$0xff]
    %s416 = scalar_lea.vmem [#allocation2], 625
    %v417 = vld [vmem:[%s416] ss:$2 sm:$0xff]
    %s418 = scalar_lea.vmem [#allocation2], 673
    %v419 = vld [vmem:[%s418] ss:$2 sm:$0xff]
    %s420 = scalar_lea.vmem [#allocation2], 721
    %v421 = vld [vmem:[%s420] ss:$2 sm:$0xff]
    %s422 = scalar_lea.vmem [#allocation2], 769
    %v423 = vld [vmem:[%s422] ss:$2 sm:$0xff]
    %v424 = vpack.c.bf16 %v395, %v393
    %v425 = vpack.c.bf16 %v399, %v397
    %v426 = vpack.c.bf16 %v403, %v401
    %v427 = vpack.c.bf16 %v407, %v405
    %v428 = vpack.c.bf16 %v411, %v409
    %v429 = vpack.c.bf16 %v415, %v413
    %v430 = vpack.c.bf16 %v419, %v417
    %v431 = vpack.c.bf16 %v423, %v421
    %v440 = vunpack.c.l.b16 %v424
    %v441 = vunpack.c.h.b16 %v424
    %v442 = vunpack.c.l.b16 %v425
    %v443 = vunpack.c.h.b16 %v425
    %v444 = vunpack.c.l.b16 %v426
    %v445 = vunpack.c.h.b16 %v426
    %v446 = vunpack.c.l.b16 %v427
    %v447 = vunpack.c.h.b16 %v427
    %v448 = vunpack.c.l.b16 %v428
    %v449 = vunpack.c.h.b16 %v428
    %v450 = vunpack.c.l.b16 %v429
    %v451 = vunpack.c.h.b16 %v429
    %v452 = vunpack.c.l.b16 %v430
    %v453 = vunpack.c.h.b16 %v430
    %v454 = vunpack.c.l.b16 %v431
    %v455 = vunpack.c.h.b16 %v431
    %v456 = vpack.c.b16 %v440, %v440
    %v457 = vpack.c.b16 %v441, %v441
    %v458 = vpack.c.b16 %v442, %v442
    %v459 = vpack.c.b16 %v443, %v443
    %v460 = vpack.c.b16 %v444, %v444
    %v461 = vpack.c.b16 %v445, %v445
    %v462 = vpack.c.b16 %v446, %v446
    %v463 = vpack.c.b16 %v447, %v447
    %v464 = vpack.c.b16 %v448, %v448
    %v465 = vpack.c.b16 %v449, %v449
    %v466 = vpack.c.b16 %v450, %v450
    %v467 = vpack.c.b16 %v451, %v451
    %v468 = vpack.c.b16 %v452, %v452
    %v469 = vpack.c.b16 %v453, %v453
    %v470 = vpack.c.b16 %v454, %v454
    %v471 = vpack.c.b16 %v455, %v455
    %472 = vrot.lane.b32.xlu0 %v456, 64
    %v473 = vpop.permute.xlu0 %472
    %474 = vrot.lane.b32.xlu0 %v457, 64
    %v475 = vpop.permute.xlu0 %474
    %476 = vrot.lane.b32.xlu0 %v458, 64
    %v477 = vpop.permute.xlu0 %476
    %478 = vrot.lane.b32.xlu0 %v459, 64
    %v479 = vpop.permute.xlu0 %478
    %480 = vrot.lane.b32.xlu0 %v460, 64
    %v481 = vpop.permute.xlu0 %480
    %482 = vrot.lane.b32.xlu0 %v461, 64
    %v483 = vpop.permute.xlu0 %482
    %484 = vrot.lane.b32.xlu0 %v462, 64
    %v485 = vpop.permute.xlu0 %484
    %486 = vrot.lane.b32.xlu0 %v463, 64
    %v487 = vpop.permute.xlu0 %486
    %488 = vrot.lane.b32.xlu0 %v464, 64
    %v489 = vpop.permute.xlu0 %488
    %490 = vrot.lane.b32.xlu0 %v465, 64
    %v491 = vpop.permute.xlu0 %490
    %492 = vrot.lane.b32.xlu0 %v466, 64
    %v493 = vpop.permute.xlu0 %492
    %494 = vrot.lane.b32.xlu0 %v467, 64
    %v495 = vpop.permute.xlu0 %494
    %496 = vrot.lane.b32.xlu0 %v468, 64
    %v497 = vpop.permute.xlu0 %496
    %498 = vrot.lane.b32.xlu0 %v469, 64
    %v499 = vpop.permute.xlu0 %498
    %500 = vrot.lane.b32.xlu0 %v470, 64
    %v501 = vpop.permute.xlu0 %500
    %502 = vrot.lane.b32.xlu0 %v471, 64
    %v503 = vpop.permute.xlu0 %502
    %vm520 = vcmask 1043968
    %521 = vst.msk [vmem:[#allocation3] sm:$0xf] %vm520, %v473
    %522 = vst.msk [vmem:[#allocation3 + $0x14] sm:$0xf] %vm520, %v475
    %523 = vst.msk [vmem:[#allocation3 + $0x28] sm:$0xf] %vm520, %v477
    %524 = vst.msk [vmem:[#allocation3 + $0x3c] sm:$0xf] %vm520, %v479
    %525 = vst.msk [vmem:[#allocation3 + $0x50] sm:$0xf] %vm520, %v481
    %526 = vst.msk [vmem:[#allocation3 + $0x64] sm:$0xf] %vm520, %v483
    %527 = vst.msk [vmem:[#allocation3 + $0x78] sm:$0xf] %vm520, %v485
    %528 = vst.msk [vmem:[#allocation3 + $0x8c] sm:$0xf] %vm520, %v487
    %529 = vst.msk [vmem:[#allocation3 + $0xa0] sm:$0xf] %vm520, %v489
    %530 = vst.msk [vmem:[#allocation3 + $0xb4] sm:$0xf] %vm520, %v491
    %531 = vst.msk [vmem:[#allocation3 + $0xc8] sm:$0xf] %vm520, %v493
    %532 = vst.msk [vmem:[#allocation3 + $0xdc] sm:$0xf] %vm520, %v495
    %533 = vst.msk [vmem:[#allocation3 + $0xf0] sm:$0xf] %vm520, %v497
    %534 = vst.msk [vmem:[#allocation3 + $0x104] sm:$0xf] %vm520, %v499
    %535 = vst.msk [vmem:[#allocation3 + $0x118] sm:$0xf] %vm520, %v501
    %536 = vst.msk [vmem:[#allocation3 + $0x12c] sm:$0xf] %vm520, %v503
    %s537 = scalar_lea.vmem [#allocation2], 2
    %v538 = vld [vmem:[%s537] ss:$2 sm:$0xff]
    %s539 = scalar_lea.vmem [#allocation2], 50
    %v540 = vld [vmem:[%s539] ss:$2 sm:$0xff]
    %s541 = scalar_lea.vmem [#allocation2], 98
    %v542 = vld [vmem:[%s541] ss:$2 sm:$0xff]
    %s543 = scalar_lea.vmem [#allocation2], 146
    %v544 = vld [vmem:[%s543] ss:$2 sm:$0xff]
    %s545 = scalar_lea.vmem [#allocation2], 194
    %v546 = vld [vmem:[%s545] ss:$2 sm:$0xff]
    %s547 = scalar_lea.vmem [#allocation2], 242
    %v548 = vld [vmem:[%s547] ss:$2 sm:$0xff]
    %s549 = scalar_lea.vmem [#allocation2], 290
    %v550 = vld [vmem:[%s549] ss:$2 sm:$0xff]
    %s551 = scalar_lea.vmem [#allocation2], 338
    %v552 = vld [vmem:[%s551] ss:$2 sm:$0xff]
    %s553 = scalar_lea.vmem [#allocation2], 434
    %v554 = vld [vmem:[%s553] ss:$2 sm:$0xff]
    %s555 = scalar_lea.vmem [#allocation2], 482
    %v556 = vld [vmem:[%s555] ss:$2 sm:$0xff]
    %s557 = scalar_lea.vmem [#allocation2], 530
    %v558 = vld [vmem:[%s557] ss:$2 sm:$0xff]
    %s559 = scalar_lea.vmem [#allocation2], 578
    %v560 = vld [vmem:[%s559] ss:$2 sm:$0xff]
    %s561 = scalar_lea.vmem [#allocation2], 626
    %v562 = vld [vmem:[%s561] ss:$2 sm:$0xff]
    %s563 = scalar_lea.vmem [#allocation2], 674
    %v564 = vld [vmem:[%s563] ss:$2 sm:$0xff]
    %s565 = scalar_lea.vmem [#allocation2], 722
    %v566 = vld [vmem:[%s565] ss:$2 sm:$0xff]
    %s567 = scalar_lea.vmem [#allocation2], 770
    %v568 = vld [vmem:[%s567] ss:$2 sm:$0xff]
    %v569 = vpack.c.bf16 %v540, %v538
    %v570 = vpack.c.bf16 %v544, %v542
    %v571 = vpack.c.bf16 %v548, %v546
    %v572 = vpack.c.bf16 %v552, %v550
    %v573 = vpack.c.bf16 %v556, %v554
    %v574 = vpack.c.bf16 %v560, %v558
    %v575 = vpack.c.bf16 %v564, %v562
    %v576 = vpack.c.bf16 %v568, %v566
    %v585 = vunpack.c.l.b16 %v569
    %v586 = vunpack.c.h.b16 %v569
    %v587 = vunpack.c.l.b16 %v570
    %v588 = vunpack.c.h.b16 %v570
    %v589 = vunpack.c.l.b16 %v571
    %v590 = vunpack.c.h.b16 %v571
    %v591 = vunpack.c.l.b16 %v572
    %v592 = vunpack.c.h.b16 %v572
    %v593 = vunpack.c.l.b16 %v573
    %v594 = vunpack.c.h.b16 %v573
    %v595 = vunpack.c.l.b16 %v574
    %v596 = vunpack.c.h.b16 %v574
    %v597 = vunpack.c.l.b16 %v575
    %v598 = vunpack.c.h.b16 %v575
    %v599 = vunpack.c.l.b16 %v576
    %v600 = vunpack.c.h.b16 %v576
    %v601 = vpack.c.b16 %v585, %v585
    %v602 = vpack.c.b16 %v586, %v586
    %v603 = vpack.c.b16 %v587, %v587
    %v604 = vpack.c.b16 %v588, %v588
    %v605 = vpack.c.b16 %v589, %v589
    %v606 = vpack.c.b16 %v590, %v590
    %v607 = vpack.c.b16 %v591, %v591
    %v608 = vpack.c.b16 %v592, %v592
    %v609 = vpack.c.b16 %v593, %v593
    %v610 = vpack.c.b16 %v594, %v594
    %v611 = vpack.c.b16 %v595, %v595
    %v612 = vpack.c.b16 %v596, %v596
    %v613 = vpack.c.b16 %v597, %v597
    %v614 = vpack.c.b16 %v598, %v598
    %v615 = vpack.c.b16 %v599, %v599
    %v616 = vpack.c.b16 %v600, %v600
    %633 = vst.msk [vmem:[#allocation3 + $0x4] sm:$0xf] %vm375, %v601
    %634 = vst.msk [vmem:[#allocation3 + $0x18] sm:$0xf] %vm375, %v602
    %635 = vst.msk [vmem:[#allocation3 + $0x2c] sm:$0xf] %vm375, %v603
    %636 = vst.msk [vmem:[#allocation3 + $0x40] sm:$0xf] %vm375, %v604
    %637 = vst.msk [vmem:[#allocation3 + $0x54] sm:$0xf] %vm375, %v605
    %638 = vst.msk [vmem:[#allocation3 + $0x68] sm:$0xf] %vm375, %v606
    %639 = vst.msk [vmem:[#allocation3 + $0x7c] sm:$0xf] %vm375, %v607
    %640 = vst.msk [vmem:[#allocation3 + $0x90] sm:$0xf] %vm375, %v608
    %641 = vst.msk [vmem:[#allocation3 + $0xa4] sm:$0xf] %vm375, %v609
    %642 = vst.msk [vmem:[#allocation3 + $0xb8] sm:$0xf] %vm375, %v610
    %643 = vst.msk [vmem:[#allocation3 + $0xcc] sm:$0xf] %vm375, %v611
    %644 = vst.msk [vmem:[#allocation3 + $0xe0] sm:$0xf] %vm375, %v612
    %645 = vst.msk [vmem:[#allocation3 + $0xf4] sm:$0xf] %vm375, %v613
    %646 = vst.msk [vmem:[#allocation3 + $0x108] sm:$0xf] %vm375, %v614
    %647 = vst.msk [vmem:[#allocation3 + $0x11c] sm:$0xf] %vm375, %v615
    %648 = vst.msk [vmem:[#allocation3 + $0x130] sm:$0xf] %vm375, %v616
    %v649 = vld [vmem:[%s215] ss:$2 sm:$0xff]
    %s650 = scalar_lea.vmem %s215, 48 [#allocation2]
    %v651 = vld [vmem:[%s650] ss:$2 sm:$0xff]
    %s652 = scalar_lea.vmem %s215, 96 [#allocation2]
    %v653 = vld [vmem:[%s652] ss:$2 sm:$0xff]
    %s654 = scalar_lea.vmem %s215, 144 [#allocation2]
    %v655 = vld [vmem:[%s654] ss:$2 sm:$0xff]
    %s656 = scalar_lea.vmem %s215, 192 [#allocation2]
    %v657 = vld [vmem:[%s656] ss:$2 sm:$0xff]
    %s658 = scalar_lea.vmem %s215, 240 [#allocation2]
    %v659 = vld [vmem:[%s658] ss:$2 sm:$0xff]
    %s660 = scalar_lea.vmem %s215, 288 [#allocation2]
    %v661 = vld [vmem:[%s660] ss:$2 sm:$0xff]
    %s662 = scalar_lea.vmem %s215, 336 [#allocation2]
    %v663 = vld [vmem:[%s662] ss:$2 sm:$0xff]
    %s664 = scalar_lea.vmem %s215, 432 [#allocation2]
    %v665 = vld [vmem:[%s664] ss:$2 sm:$0xff]
    %s666 = scalar_lea.vmem %s215, 480 [#allocation2]
    %v667 = vld [vmem:[%s666] ss:$2 sm:$0xff]
    %s668 = scalar_lea.vmem %s215, 528 [#allocation2]
    %v669 = vld [vmem:[%s668] ss:$2 sm:$0xff]
    %s670 = scalar_lea.vmem %s215, 576 [#allocation2]
    %v671 = vld [vmem:[%s670] ss:$2 sm:$0xff]
    %s672 = scalar_lea.vmem %s215, 624 [#allocation2]
    %v673 = vld [vmem:[%s672] ss:$2 sm:$0xff]
    %s674 = scalar_lea.vmem %s215, 672 [#allocation2]
    %v675 = vld [vmem:[%s674] ss:$2 sm:$0xff]
    %s676 = scalar_lea.vmem %s215, 720 [#allocation2]
    %v677 = vld [vmem:[%s676] ss:$2 sm:$0xff]
    %s678 = scalar_lea.vmem %s215, 768 [#allocation2]
    %v679 = vld [vmem:[%s678] ss:$2 sm:$0xff]
    %v680 = vpack.c.bf16 %v651, %v649
    %v681 = vpack.c.bf16 %v655, %v653
    %v682 = vpack.c.bf16 %v659, %v657
    %v683 = vpack.c.bf16 %v663, %v661
    %v684 = vpack.c.bf16 %v667, %v665
    %v685 = vpack.c.bf16 %v671, %v669
    %v686 = vpack.c.bf16 %v675, %v673
    %v687 = vpack.c.bf16 %v679, %v677
    %v696 = vunpack.c.l.b16 %v680
    %v697 = vunpack.c.h.b16 %v680
    %v698 = vunpack.c.l.b16 %v681
    %v699 = vunpack.c.h.b16 %v681
    %v700 = vunpack.c.l.b16 %v682
    %v701 = vunpack.c.h.b16 %v682
    %v702 = vunpack.c.l.b16 %v683
    %v703 = vunpack.c.h.b16 %v683
    %v704 = vunpack.c.l.b16 %v684
    %v705 = vunpack.c.h.b16 %v684
    %v706 = vunpack.c.l.b16 %v685
    %v707 = vunpack.c.h.b16 %v685
    %v708 = vunpack.c.l.b16 %v686
    %v709 = vunpack.c.h.b16 %v686
    %v710 = vunpack.c.l.b16 %v687
    %v711 = vunpack.c.h.b16 %v687
    %v712 = vpack.c.b16 %v696, %v696
    %v713 = vpack.c.b16 %v697, %v697
    %v714 = vpack.c.b16 %v698, %v698
    %v715 = vpack.c.b16 %v699, %v699
    %v716 = vpack.c.b16 %v700, %v700
    %v717 = vpack.c.b16 %v701, %v701
    %v718 = vpack.c.b16 %v702, %v702
    %v719 = vpack.c.b16 %v703, %v703
    %v720 = vpack.c.b16 %v704, %v704
    %v721 = vpack.c.b16 %v705, %v705
    %v722 = vpack.c.b16 %v706, %v706
    %v723 = vpack.c.b16 %v707, %v707
    %v724 = vpack.c.b16 %v708, %v708
    %v725 = vpack.c.b16 %v709, %v709
    %v726 = vpack.c.b16 %v710, %v710
    %v727 = vpack.c.b16 %v711, %v711
    %728 = vrot.lane.b32.xlu0 %v712, 64
    %v729 = vpop.permute.xlu0 %728
    %730 = vrot.lane.b32.xlu0 %v713, 64
    %v731 = vpop.permute.xlu0 %730
    %732 = vrot.lane.b32.xlu0 %v714, 64
    %v733 = vpop.permute.xlu0 %732
    %734 = vrot.lane.b32.xlu0 %v715, 64
    %v735 = vpop.permute.xlu0 %734
    %736 = vrot.lane.b32.xlu0 %v716, 64
    %v737 = vpop.permute.xlu0 %736
    %738 = vrot.lane.b32.xlu0 %v717, 64
    %v739 = vpop.permute.xlu0 %738
    %740 = vrot.lane.b32.xlu0 %v718, 64
    %v741 = vpop.permute.xlu0 %740
    %742 = vrot.lane.b32.xlu0 %v719, 64
    %v743 = vpop.permute.xlu0 %742
    %744 = vrot.lane.b32.xlu0 %v720, 64
    %v745 = vpop.permute.xlu0 %744
    %746 = vrot.lane.b32.xlu0 %v721, 64
    %v747 = vpop.permute.xlu0 %746
    %748 = vrot.lane.b32.xlu0 %v722, 64
    %v749 = vpop.permute.xlu0 %748
    %750 = vrot.lane.b32.xlu0 %v723, 64
    %v751 = vpop.permute.xlu0 %750
    %752 = vrot.lane.b32.xlu0 %v724, 64
    %v753 = vpop.permute.xlu0 %752
    %754 = vrot.lane.b32.xlu0 %v725, 64
    %v755 = vpop.permute.xlu0 %754
    %756 = vrot.lane.b32.xlu0 %v726, 64
    %v757 = vpop.permute.xlu0 %756
    %758 = vrot.lane.b32.xlu0 %v727, 64
    %v759 = vpop.permute.xlu0 %758
    %776 = vst.msk [vmem:[#allocation3 + $0x4] sm:$0xf] %vm520, %v729
    %777 = vst.msk [vmem:[#allocation3 + $0x18] sm:$0xf] %vm520, %v731
    %778 = vst.msk [vmem:[#allocation3 + $0x2c] sm:$0xf] %vm520, %v733
    %779 = vst.msk [vmem:[#allocation3 + $0x40] sm:$0xf] %vm520, %v735
    %780 = vst.msk [vmem:[#allocation3 + $0x54] sm:$0xf] %vm520, %v737
    %781 = vst.msk [vmem:[#allocation3 + $0x68] sm:$0xf] %vm520, %v739
    %782 = vst.msk [vmem:[#allocation3 + $0x7c] sm:$0xf] %vm520, %v741
    %783 = vst.msk [vmem:[#allocation3 + $0x90] sm:$0xf] %vm520, %v743
    %784 = vst.msk [vmem:[#allocation3 + $0xa4] sm:$0xf] %vm520, %v745
    %785 = vst.msk [vmem:[#allocation3 + $0xb8] sm:$0xf] %vm520, %v747
    %786 = vst.msk [vmem:[#allocation3 + $0xcc] sm:$0xf] %vm520, %v749
    %787 = vst.msk [vmem:[#allocation3 + $0xe0] sm:$0xf] %vm520, %v751
    %788 = vst.msk [vmem:[#allocation3 + $0xf4] sm:$0xf] %vm520, %v753
    %789 = vst.msk [vmem:[#allocation3 + $0x108] sm:$0xf] %vm520, %v755
    %790 = vst.msk [vmem:[#allocation3 + $0x11c] sm:$0xf] %vm520, %v757
    %791 = vst.msk [vmem:[#allocation3 + $0x130] sm:$0xf] %vm520, %v759
    %s792 = scalar_lea.vmem %s215, 1 [#allocation2]
    %v793 = vld [vmem:[%s792] ss:$2 sm:$0xff]
    %s794 = scalar_lea.vmem %s215, 49 [#allocation2]
    %v795 = vld [vmem:[%s794] ss:$2 sm:$0xff]
    %s796 = scalar_lea.vmem %s215, 97 [#allocation2]
    %v797 = vld [vmem:[%s796] ss:$2 sm:$0xff]
    %s798 = scalar_lea.vmem %s215, 145 [#allocation2]
    %v799 = vld [vmem:[%s798] ss:$2 sm:$0xff]
    %s800 = scalar_lea.vmem %s215, 193 [#allocation2]
    %v801 = vld [vmem:[%s800] ss:$2 sm:$0xff]
    %s802 = scalar_lea.vmem %s215, 241 [#allocation2]
    %v803 = vld [vmem:[%s802] ss:$2 sm:$0xff]
    %s804 = scalar_lea.vmem %s215, 289 [#allocation2]
    %v805 = vld [vmem:[%s804] ss:$2 sm:$0xff]
    %s806 = scalar_lea.vmem %s215, 337 [#allocation2]
    %v807 = vld [vmem:[%s806] ss:$2 sm:$0xff]
    %s808 = scalar_lea.vmem %s215, 433 [#allocation2]
    %v809 = vld [vmem:[%s808] ss:$2 sm:$0xff]
    %s810 = scalar_lea.vmem %s215, 481 [#allocation2]
    %v811 = vld [vmem:[%s810] ss:$2 sm:$0xff]
    %s812 = scalar_lea.vmem %s215, 529 [#allocation2]
    %v813 = vld [vmem:[%s812] ss:$2 sm:$0xff]
    %s814 = scalar_lea.vmem %s215, 577 [#allocation2]
    %v815 = vld [vmem:[%s814] ss:$2 sm:$0xff]
    %s816 = scalar_lea.vmem %s215, 625 [#allocation2]
    %v817 = vld [vmem:[%s816] ss:$2 sm:$0xff]
    %s818 = scalar_lea.vmem %s215, 673 [#allocation2]
    %v819 = vld [vmem:[%s818] ss:$2 sm:$0xff]
    %s820 = scalar_lea.vmem %s215, 721 [#allocation2]
    %v821 = vld [vmem:[%s820] ss:$2 sm:$0xff]
    %s822 = scalar_lea.vmem %s215, 769 [#allocation2]
    %v823 = vld [vmem:[%s822] ss:$2 sm:$0xff]
    %v824 = vpack.c.bf16 %v795, %v793
    %v825 = vpack.c.bf16 %v799, %v797
    %v826 = vpack.c.bf16 %v803, %v801
    %v827 = vpack.c.bf16 %v807, %v805
    %v828 = vpack.c.bf16 %v811, %v809
    %v829 = vpack.c.bf16 %v815, %v813
    %v830 = vpack.c.bf16 %v819, %v817
    %v831 = vpack.c.bf16 %v823, %v821
    %v840 = vunpack.c.l.b16 %v824
    %v841 = vunpack.c.h.b16 %v824
    %v842 = vunpack.c.l.b16 %v825
    %v843 = vunpack.c.h.b16 %v825
    %v844 = vunpack.c.l.b16 %v826
    %v845 = vunpack.c.h.b16 %v826
    %v846 = vunpack.c.l.b16 %v827
    %v847 = vunpack.c.h.b16 %v827
    %v848 = vunpack.c.l.b16 %v828
    %v849 = vunpack.c.h.b16 %v828
    %v850 = vunpack.c.l.b16 %v829
    %v851 = vunpack.c.h.b16 %v829
    %v852 = vunpack.c.l.b16 %v830
    %v853 = vunpack.c.h.b16 %v830
    %v854 = vunpack.c.l.b16 %v831
    %v855 = vunpack.c.h.b16 %v831
    %v856 = vpack.c.b16 %v840, %v840
    %v857 = vpack.c.b16 %v841, %v841
    %v858 = vpack.c.b16 %v842, %v842
    %v859 = vpack.c.b16 %v843, %v843
    %v860 = vpack.c.b16 %v844, %v844
    %v861 = vpack.c.b16 %v845, %v845
    %v862 = vpack.c.b16 %v846, %v846
    %v863 = vpack.c.b16 %v847, %v847
    %v864 = vpack.c.b16 %v848, %v848
    %v865 = vpack.c.b16 %v849, %v849
    %v866 = vpack.c.b16 %v850, %v850
    %v867 = vpack.c.b16 %v851, %v851
    %v868 = vpack.c.b16 %v852, %v852
    %v869 = vpack.c.b16 %v853, %v853
    %v870 = vpack.c.b16 %v854, %v854
    %v871 = vpack.c.b16 %v855, %v855
    %888 = vst.msk [vmem:[#allocation3 + $0x8] sm:$0xf] %vm375, %v856
    %889 = vst.msk [vmem:[#allocation3 + $0x1c] sm:$0xf] %vm375, %v857
    %890 = vst.msk [vmem:[#allocation3 + $0x30] sm:$0xf] %vm375, %v858
    %891 = vst.msk [vmem:[#allocation3 + $0x44] sm:$0xf] %vm375, %v859
    %892 = vst.msk [vmem:[#allocation3 + $0x58] sm:$0xf] %vm375, %v860
    %893 = vst.msk [vmem:[#allocation3 + $0x6c] sm:$0xf] %vm375, %v861
    %894 = vst.msk [vmem:[#allocation3 + $0x80] sm:$0xf] %vm375, %v862
    %895 = vst.msk [vmem:[#allocation3 + $0x94] sm:$0xf] %vm375, %v863
    %896 = vst.msk [vmem:[#allocation3 + $0xa8] sm:$0xf] %vm375, %v864
    %897 = vst.msk [vmem:[#allocation3 + $0xbc] sm:$0xf] %vm375, %v865
    %898 = vst.msk [vmem:[#allocation3 + $0xd0] sm:$0xf] %vm375, %v866
    %899 = vst.msk [vmem:[#allocation3 + $0xe4] sm:$0xf] %vm375, %v867
    %900 = vst.msk [vmem:[#allocation3 + $0xf8] sm:$0xf] %vm375, %v868
    %901 = vst.msk [vmem:[#allocation3 + $0x10c] sm:$0xf] %vm375, %v869
    %902 = vst.msk [vmem:[#allocation3 + $0x120] sm:$0xf] %vm375, %v870
    %903 = vst.msk [vmem:[#allocation3 + $0x134] sm:$0xf] %vm375, %v871
    %s904 = scalar_lea.vmem %s215, 2 [#allocation2]
    %v905 = vld [vmem:[%s904] ss:$2 sm:$0xff]
    %s906 = scalar_lea.vmem %s215, 50 [#allocation2]
    %v907 = vld [vmem:[%s906] ss:$2 sm:$0xff]
    %s908 = scalar_lea.vmem %s215, 98 [#allocation2]
    %v909 = vld [vmem:[%s908] ss:$2 sm:$0xff]
    %s910 = scalar_lea.vmem %s215, 146 [#allocation2]
    %v911 = vld [vmem:[%s910] ss:$2 sm:$0xff]
    %s912 = scalar_lea.vmem %s215, 194 [#allocation2]
    %v913 = vld [vmem:[%s912] ss:$2 sm:$0xff]
    %s914 = scalar_lea.vmem %s215, 242 [#allocation2]
    %v915 = vld [vmem:[%s914] ss:$2 sm:$0xff]
    %s916 = scalar_lea.vmem %s215, 290 [#allocation2]
    %v917 = vld [vmem:[%s916] ss:$2 sm:$0xff]
    %s918 = scalar_lea.vmem %s215, 338 [#allocation2]
    %v919 = vld [vmem:[%s918] ss:$2 sm:$0xff]
    %s920 = scalar_lea.vmem %s215, 434 [#allocation2]
    %v921 = vld [vmem:[%s920] ss:$2 sm:$0xff]
    %s922 = scalar_lea.vmem %s215, 482 [#allocation2]
    %v923 = vld [vmem:[%s922] ss:$2 sm:$0xff]
    %s924 = scalar_lea.vmem %s215, 530 [#allocation2]
    %v925 = vld [vmem:[%s924] ss:$2 sm:$0xff]
    %s926 = scalar_lea.vmem %s215, 578 [#allocation2]
    %v927 = vld [vmem:[%s926] ss:$2 sm:$0xff]
    %s928 = scalar_lea.vmem %s215, 626 [#allocation2]
    %v929 = vld [vmem:[%s928] ss:$2 sm:$0xff]
    %s930 = scalar_lea.vmem %s215, 674 [#allocation2]
    %v931 = vld [vmem:[%s930] ss:$2 sm:$0xff]
    %s932 = scalar_lea.vmem %s215, 722 [#allocation2]
    %v933 = vld [vmem:[%s932] ss:$2 sm:$0xff]
    %s934 = scalar_lea.vmem %s215, 770 [#allocation2]
    %v935 = vld [vmem:[%s934] ss:$2 sm:$0xff]
    %v936 = vpack.c.bf16 %v907, %v905
    %v937 = vpack.c.bf16 %v911, %v909
    %v938 = vpack.c.bf16 %v915, %v913
    %v939 = vpack.c.bf16 %v919, %v917
    %v940 = vpack.c.bf16 %v923, %v921
    %v941 = vpack.c.bf16 %v927, %v925
    %v942 = vpack.c.bf16 %v931, %v929
    %v943 = vpack.c.bf16 %v935, %v933
    %v952 = vunpack.c.l.b16 %v936
    %v953 = vunpack.c.h.b16 %v936
    %v954 = vunpack.c.l.b16 %v937
    %v955 = vunpack.c.h.b16 %v937
    %v956 = vunpack.c.l.b16 %v938
    %v957 = vunpack.c.h.b16 %v938
    %v958 = vunpack.c.l.b16 %v939
    %v959 = vunpack.c.h.b16 %v939
    %v960 = vunpack.c.l.b16 %v940
    %v961 = vunpack.c.h.b16 %v940
    %v962 = vunpack.c.l.b16 %v941
    %v963 = vunpack.c.h.b16 %v941
    %v964 = vunpack.c.l.b16 %v942
    %v965 = vunpack.c.h.b16 %v942
    %v966 = vunpack.c.l.b16 %v943
    %v967 = vunpack.c.h.b16 %v943
    %v968 = vpack.c.b16 %v952, %v952
    %v969 = vpack.c.b16 %v953, %v953
    %v970 = vpack.c.b16 %v954, %v954
    %v971 = vpack.c.b16 %v955, %v955
    %v972 = vpack.c.b16 %v956, %v956
    %v973 = vpack.c.b16 %v957, %v957
    %v974 = vpack.c.b16 %v958, %v958
    %v975 = vpack.c.b16 %v959, %v959
    %v976 = vpack.c.b16 %v960, %v960
    %v977 = vpack.c.b16 %v961, %v961
    %v978 = vpack.c.b16 %v962, %v962
    %v979 = vpack.c.b16 %v963, %v963
    %v980 = vpack.c.b16 %v964, %v964
    %v981 = vpack.c.b16 %v965, %v965
    %v982 = vpack.c.b16 %v966, %v966
    %v983 = vpack.c.b16 %v967, %v967
    %984 = vrot.lane.b32.xlu0 %v968, 64
    %v985 = vpop.permute.xlu0 %984
    %986 = vrot.lane.b32.xlu0 %v969, 64
    %v987 = vpop.permute.xlu0 %986
    %988 = vrot.lane.b32.xlu0 %v970, 64
    %v989 = vpop.permute.xlu0 %988
    %990 = vrot.lane.b32.xlu0 %v971, 64
    %v991 = vpop.permute.xlu0 %990
    %992 = vrot.lane.b32.xlu0 %v972, 64
    %v993 = vpop.permute.xlu0 %992
    %994 = vrot.lane.b32.xlu0 %v973, 64
    %v995 = vpop.permute.xlu0 %994
    %996 = vrot.lane.b32.xlu0 %v974, 64
    %v997 = vpop.permute.xlu0 %996
    %998 = vrot.lane.b32.xlu0 %v975, 64
    %v999 = vpop.permute.xlu0 %998
    %1000 = vrot.lane.b32.xlu0 %v976, 64
    %v1001 = vpop.permute.xlu0 %1000
    %1002 = vrot.lane.b32.xlu0 %v977, 64
    %v1003 = vpop.permute.xlu0 %1002
    %1004 = vrot.lane.b32.xlu0 %v978, 64
    %v1005 = vpop.permute.xlu0 %1004
    %1006 = vrot.lane.b32.xlu0 %v979, 64
    %v1007 = vpop.permute.xlu0 %1006
    %1008 = vrot.lane.b32.xlu0 %v980, 64
    %v1009 = vpop.permute.xlu0 %1008
    %1010 = vrot.lane.b32.xlu0 %v981, 64
    %v1011 = vpop.permute.xlu0 %1010
    %1012 = vrot.lane.b32.xlu0 %v982, 64
    %v1013 = vpop.permute.xlu0 %1012
    %1014 = vrot.lane.b32.xlu0 %v983, 64
    %v1015 = vpop.permute.xlu0 %1014
    %1032 = vst.msk [vmem:[#allocation3 + $0x8] sm:$0xf] %vm520, %v985
    %1033 = vst.msk [vmem:[#allocation3 + $0x1c] sm:$0xf] %vm520, %v987
    %1034 = vst.msk [vmem:[#allocation3 + $0x30] sm:$0xf] %vm520, %v989
    %1035 = vst.msk [vmem:[#allocation3 + $0x44] sm:$0xf] %vm520, %v991
    %1036 = vst.msk [vmem:[#allocation3 + $0x58] sm:$0xf] %vm520, %v993
    %1037 = vst.msk [vmem:[#allocation3 + $0x6c] sm:$0xf] %vm520, %v995
    %1038 = vst.msk [vmem:[#allocation3 + $0x80] sm:$0xf] %vm520, %v997
    %1039 = vst.msk [vmem:[#allocation3 + $0x94] sm:$0xf] %vm520, %v999
    %1040 = vst.msk [vmem:[#allocation3 + $0xa8] sm:$0xf] %vm520, %v1001
    %1041 = vst.msk [vmem:[#allocation3 + $0xbc] sm:$0xf] %vm520, %v1003
    %1042 = vst.msk [vmem:[#allocation3 + $0xd0] sm:$0xf] %vm520, %v1005
    %1043 = vst.msk [vmem:[#allocation3 + $0xe4] sm:$0xf] %vm520, %v1007
    %1044 = vst.msk [vmem:[#allocation3 + $0xf8] sm:$0xf] %vm520, %v1009
    %1045 = vst.msk [vmem:[#allocation3 + $0x10c] sm:$0xf] %vm520, %v1011
    %1046 = vst.msk [vmem:[#allocation3 + $0x120] sm:$0xf] %vm520, %v1013
    %1047 = vst.msk [vmem:[#allocation3 + $0x134] sm:$0xf] %vm520, %v1015
    %s1048 = scalar_lea.vmem [#allocation2], 48
    %v1049 = vld [vmem:[%s1048] ss:$2 sm:$0xff]
    %s1050 = scalar_lea.vmem %s1048, 48 [#allocation2]
    %v1051 = vld [vmem:[%s1050] ss:$2 sm:$0xff]
    %s1052 = scalar_lea.vmem %s1048, 96 [#allocation2]
    %v1053 = vld [vmem:[%s1052] ss:$2 sm:$0xff]
    %s1054 = scalar_lea.vmem %s1048, 144 [#allocation2]
    %v1055 = vld [vmem:[%s1054] ss:$2 sm:$0xff]
    %s1056 = scalar_lea.vmem %s1048, 192 [#allocation2]
    %v1057 = vld [vmem:[%s1056] ss:$2 sm:$0xff]
    %s1058 = scalar_lea.vmem %s1048, 240 [#allocation2]
    %v1059 = vld [vmem:[%s1058] ss:$2 sm:$0xff]
    %s1060 = scalar_lea.vmem %s1048, 288 [#allocation2]
    %v1061 = vld [vmem:[%s1060] ss:$2 sm:$0xff]
    %s1062 = scalar_lea.vmem %s1048, 336 [#allocation2]
    %v1063 = vld [vmem:[%s1062] ss:$2 sm:$0xff]
    %s1064 = scalar_lea.vmem %s1048, 432 [#allocation2]
    %v1065 = vld [vmem:[%s1064] ss:$2 sm:$0xff]
    %s1066 = scalar_lea.vmem %s1048, 480 [#allocation2]
    %v1067 = vld [vmem:[%s1066] ss:$2 sm:$0xff]
    %s1068 = scalar_lea.vmem %s1048, 528 [#allocation2]
    %v1069 = vld [vmem:[%s1068] ss:$2 sm:$0xff]
    %s1070 = scalar_lea.vmem %s1048, 576 [#allocation2]
    %v1071 = vld [vmem:[%s1070] ss:$2 sm:$0xff]
    %s1072 = scalar_lea.vmem %s1048, 624 [#allocation2]
    %v1073 = vld [vmem:[%s1072] ss:$2 sm:$0xff]
    %s1074 = scalar_lea.vmem %s1048, 672 [#allocation2]
    %v1075 = vld [vmem:[%s1074] ss:$2 sm:$0xff]
    %s1076 = scalar_lea.vmem %s1048, 720 [#allocation2]
    %v1077 = vld [vmem:[%s1076] ss:$2 sm:$0xff]
    %s1078 = scalar_lea.vmem %s1048, 768 [#allocation2]
    %v1079 = vld [vmem:[%s1078] ss:$2 sm:$0xff]
    %v1080 = vpack.c.bf16 %v1051, %v1049
    %v1081 = vpack.c.bf16 %v1055, %v1053
    %v1082 = vpack.c.bf16 %v1059, %v1057
    %v1083 = vpack.c.bf16 %v1063, %v1061
    %v1084 = vpack.c.bf16 %v1067, %v1065
    %v1085 = vpack.c.bf16 %v1071, %v1069
    %v1086 = vpack.c.bf16 %v1075, %v1073
    %v1087 = vpack.c.bf16 %v1079, %v1077
    %v1096 = vunpack.c.l.b16 %v1080
    %v1097 = vunpack.c.h.b16 %v1080
    %v1098 = vunpack.c.l.b16 %v1081
    %v1099 = vunpack.c.h.b16 %v1081
    %v1100 = vunpack.c.l.b16 %v1082
    %v1101 = vunpack.c.h.b16 %v1082
    %v1102 = vunpack.c.l.b16 %v1083
    %v1103 = vunpack.c.h.b16 %v1083
    %v1104 = vunpack.c.l.b16 %v1084
    %v1105 = vunpack.c.h.b16 %v1084
    %v1106 = vunpack.c.l.b16 %v1085
    %v1107 = vunpack.c.h.b16 %v1085
    %v1108 = vunpack.c.l.b16 %v1086
    %v1109 = vunpack.c.h.b16 %v1086
    %v1110 = vunpack.c.l.b16 %v1087
    %v1111 = vunpack.c.h.b16 %v1087
    %v1112 = vpack.c.b16 %v1096, %v1096
    %v1113 = vpack.c.b16 %v1097, %v1097
    %v1114 = vpack.c.b16 %v1098, %v1098
    %v1115 = vpack.c.b16 %v1099, %v1099
    %v1116 = vpack.c.b16 %v1100, %v1100
    %v1117 = vpack.c.b16 %v1101, %v1101
    %v1118 = vpack.c.b16 %v1102, %v1102
    %v1119 = vpack.c.b16 %v1103, %v1103
    %v1120 = vpack.c.b16 %v1104, %v1104
    %v1121 = vpack.c.b16 %v1105, %v1105
    %v1122 = vpack.c.b16 %v1106, %v1106
    %v1123 = vpack.c.b16 %v1107, %v1107
    %v1124 = vpack.c.b16 %v1108, %v1108
    %v1125 = vpack.c.b16 %v1109, %v1109
    %v1126 = vpack.c.b16 %v1110, %v1110
    %v1127 = vpack.c.b16 %v1111, %v1111
    %1144 = vst.msk [vmem:[#allocation3 + $0xc] sm:$0xf] %vm375, %v1112
    %1145 = vst.msk [vmem:[#allocation3 + $0x20] sm:$0xf] %vm375, %v1113
    %1146 = vst.msk [vmem:[#allocation3 + $0x34] sm:$0xf] %vm375, %v1114
    %1147 = vst.msk [vmem:[#allocation3 + $0x48] sm:$0xf] %vm375, %v1115
    %1148 = vst.msk [vmem:[#allocation3 + $0x5c] sm:$0xf] %vm375, %v1116
    %1149 = vst.msk [vmem:[#allocation3 + $0x70] sm:$0xf] %vm375, %v1117
    %1150 = vst.msk [vmem:[#allocation3 + $0x84] sm:$0xf] %vm375, %v1118
    %1151 = vst.msk [vmem:[#allocation3 + $0x98] sm:$0xf] %vm375, %v1119
    %1152 = vst.msk [vmem:[#allocation3 + $0xac] sm:$0xf] %vm375, %v1120
    %1153 = vst.msk [vmem:[#allocation3 + $0xc0] sm:$0xf] %vm375, %v1121
    %1154 = vst.msk [vmem:[#allocation3 + $0xd4] sm:$0xf] %vm375, %v1122
    %1155 = vst.msk [vmem:[#allocation3 + $0xe8] sm:$0xf] %vm375, %v1123
    %1156 = vst.msk [vmem:[#allocation3 + $0xfc] sm:$0xf] %vm375, %v1124
    %1157 = vst.msk [vmem:[#allocation3 + $0x110] sm:$0xf] %vm375, %v1125
    %1158 = vst.msk [vmem:[#allocation3 + $0x124] sm:$0xf] %vm375, %v1126
    %1159 = vst.msk [vmem:[#allocation3 + $0x138] sm:$0xf] %vm375, %v1127
    %s1160 = scalar_lea.vmem %s1048, 1 [#allocation2]
    %v1161 = vld [vmem:[%s1160] ss:$2 sm:$0xff]
    %s1162 = scalar_lea.vmem %s1048, 49 [#allocation2]
    %v1163 = vld [vmem:[%s1162] ss:$2 sm:$0xff]
    %s1164 = scalar_lea.vmem %s1048, 97 [#allocation2]
    %v1165 = vld [vmem:[%s1164] ss:$2 sm:$0xff]
    %s1166 = scalar_lea.vmem %s1048, 145 [#allocation2]
    %v1167 = vld [vmem:[%s1166] ss:$2 sm:$0xff]
    %s1168 = scalar_lea.vmem %s1048, 193 [#allocation2]
    %v1169 = vld [vmem:[%s1168] ss:$2 sm:$0xff]
    %s1170 = scalar_lea.vmem %s1048, 241 [#allocation2]
    %v1171 = vld [vmem:[%s1170] ss:$2 sm:$0xff]
    %s1172 = scalar_lea.vmem %s1048, 289 [#allocation2]
    %v1173 = vld [vmem:[%s1172] ss:$2 sm:$0xff]
    %s1174 = scalar_lea.vmem %s1048, 337 [#allocation2]
    %v1175 = vld [vmem:[%s1174] ss:$2 sm:$0xff]
    %s1176 = scalar_lea.vmem %s1048, 433 [#allocation2]
    %v1177 = vld [vmem:[%s1176] ss:$2 sm:$0xff]
    %s1178 = scalar_lea.vmem %s1048, 481 [#allocation2]
    %v1179 = vld [vmem:[%s1178] ss:$2 sm:$0xff]
    %s1180 = scalar_lea.vmem %s1048, 529 [#allocation2]
    %v1181 = vld [vmem:[%s1180] ss:$2 sm:$0xff]
    %s1182 = scalar_lea.vmem %s1048, 577 [#allocation2]
    %v1183 = vld [vmem:[%s1182] ss:$2 sm:$0xff]
    %s1184 = scalar_lea.vmem %s1048, 625 [#allocation2]
    %v1185 = vld [vmem:[%s1184] ss:$2 sm:$0xff]
    %s1186 = scalar_lea.vmem %s1048, 673 [#allocation2]
    %v1187 = vld [vmem:[%s1186] ss:$2 sm:$0xff]
    %s1188 = scalar_lea.vmem %s1048, 721 [#allocation2]
    %v1189 = vld [vmem:[%s1188] ss:$2 sm:$0xff]
    %s1190 = scalar_lea.vmem %s1048, 769 [#allocation2]
    %v1191 = vld [vmem:[%s1190] ss:$2 sm:$0xff]
    %v1192 = vpack.c.bf16 %v1163, %v1161
    %v1193 = vpack.c.bf16 %v1167, %v1165
    %v1194 = vpack.c.bf16 %v1171, %v1169
    %v1195 = vpack.c.bf16 %v1175, %v1173
    %v1196 = vpack.c.bf16 %v1179, %v1177
    %v1197 = vpack.c.bf16 %v1183, %v1181
    %v1198 = vpack.c.bf16 %v1187, %v1185
    %v1199 = vpack.c.bf16 %v1191, %v1189
    %v1208 = vunpack.c.l.b16 %v1192
    %v1209 = vunpack.c.h.b16 %v1192
    %v1210 = vunpack.c.l.b16 %v1193
    %v1211 = vunpack.c.h.b16 %v1193
    %v1212 = vunpack.c.l.b16 %v1194
    %v1213 = vunpack.c.h.b16 %v1194
    %v1214 = vunpack.c.l.b16 %v1195
    %v1215 = vunpack.c.h.b16 %v1195
    %v1216 = vunpack.c.l.b16 %v1196
    %v1217 = vunpack.c.h.b16 %v1196
    %v1218 = vunpack.c.l.b16 %v1197
    %v1219 = vunpack.c.h.b16 %v1197
    %v1220 = vunpack.c.l.b16 %v1198
    %v1221 = vunpack.c.h.b16 %v1198
    %v1222 = vunpack.c.l.b16 %v1199
    %v1223 = vunpack.c.h.b16 %v1199
    %v1224 = vpack.c.b16 %v1208, %v1208
    %v1225 = vpack.c.b16 %v1209, %v1209
    %v1226 = vpack.c.b16 %v1210, %v1210
    %v1227 = vpack.c.b16 %v1211, %v1211
    %v1228 = vpack.c.b16 %v1212, %v1212
    %v1229 = vpack.c.b16 %v1213, %v1213
    %v1230 = vpack.c.b16 %v1214, %v1214
    %v1231 = vpack.c.b16 %v1215, %v1215
    %v1232 = vpack.c.b16 %v1216, %v1216
    %v1233 = vpack.c.b16 %v1217, %v1217
    %v1234 = vpack.c.b16 %v1218, %v1218
    %v1235 = vpack.c.b16 %v1219, %v1219
    %v1236 = vpack.c.b16 %v1220, %v1220
    %v1237 = vpack.c.b16 %v1221, %v1221
    %v1238 = vpack.c.b16 %v1222, %v1222
    %v1239 = vpack.c.b16 %v1223, %v1223
    %1240 = vrot.lane.b32.xlu0 %v1224, 64
    %v1241 = vpop.permute.xlu0 %1240
    %1242 = vrot.lane.b32.xlu0 %v1225, 64
    %v1243 = vpop.permute.xlu0 %1242
    %1244 = vrot.lane.b32.xlu0 %v1226, 64
    %v1245 = vpop.permute.xlu0 %1244
    %1246 = vrot.lane.b32.xlu0 %v1227, 64
    %v1247 = vpop.permute.xlu0 %1246
    %1248 = vrot.lane.b32.xlu0 %v1228, 64
    %v1249 = vpop.permute.xlu0 %1248
    %1250 = vrot.lane.b32.xlu0 %v1229, 64
    %v1251 = vpop.permute.xlu0 %1250
    %1252 = vrot.lane.b32.xlu0 %v1230, 64
    %v1253 = vpop.permute.xlu0 %1252
    %1254 = vrot.lane.b32.xlu0 %v1231, 64
    %v1255 = vpop.permute.xlu0 %1254
    %1256 = vrot.lane.b32.xlu0 %v1232, 64
    %v1257 = vpop.permute.xlu0 %1256
    %1258 = vrot.lane.b32.xlu0 %v1233, 64
    %v1259 = vpop.permute.xlu0 %1258
    %1260 = vrot.lane.b32.xlu0 %v1234, 64
    %v1261 = vpop.permute.xlu0 %1260
    %1262 = vrot.lane.b32.xlu0 %v1235, 64
    %v1263 = vpop.permute.xlu0 %1262
    %1264 = vrot.lane.b32.xlu0 %v1236, 64
    %v1265 = vpop.permute.xlu0 %1264
    %1266 = vrot.lane.b32.xlu0 %v1237, 64
    %v1267 = vpop.permute.xlu0 %1266
    %1268 = vrot.lane.b32.xlu0 %v1238, 64
    %v1269 = vpop.permute.xlu0 %1268
    %1270 = vrot.lane.b32.xlu0 %v1239, 64
    %v1271 = vpop.permute.xlu0 %1270
    %1288 = vst.msk [vmem:[#allocation3 + $0xc] sm:$0xf] %vm520, %v1241
    %1289 = vst.msk [vmem:[#allocation3 + $0x20] sm:$0xf] %vm520, %v1243
    %1290 = vst.msk [vmem:[#allocation3 + $0x34] sm:$0xf] %vm520, %v1245
    %1291 = vst.msk [vmem:[#allocation3 + $0x48] sm:$0xf] %vm520, %v1247
    %1292 = vst.msk [vmem:[#allocation3 + $0x5c] sm:$0xf] %vm520, %v1249
    %1293 = vst.msk [vmem:[#allocation3 + $0x70] sm:$0xf] %vm520, %v1251
    %1294 = vst.msk [vmem:[#allocation3 + $0x84] sm:$0xf] %vm520, %v1253
    %1295 = vst.msk [vmem:[#allocation3 + $0x98] sm:$0xf] %vm520, %v1255
    %1296 = vst.msk [vmem:[#allocation3 + $0xac] sm:$0xf] %vm520, %v1257
    %1297 = vst.msk [vmem:[#allocation3 + $0xc0] sm:$0xf] %vm520, %v1259
    %1298 = vst.msk [vmem:[#allocation3 + $0xd4] sm:$0xf] %vm520, %v1261
    %1299 = vst.msk [vmem:[#allocation3 + $0xe8] sm:$0xf] %vm520, %v1263
    %1300 = vst.msk [vmem:[#allocation3 + $0xfc] sm:$0xf] %vm520, %v1265
    %1301 = vst.msk [vmem:[#allocation3 + $0x110] sm:$0xf] %vm520, %v1267
    %1302 = vst.msk [vmem:[#allocation3 + $0x124] sm:$0xf] %vm520, %v1269
    %1303 = vst.msk [vmem:[#allocation3 + $0x138] sm:$0xf] %vm520, %v1271
    %s1304 = scalar_lea.vmem %s1048, 2 [#allocation2]
    %v1305 = vld [vmem:[%s1304] ss:$2 sm:$0xff]
    %s1306 = scalar_lea.vmem %s1048, 50 [#allocation2]
    %v1307 = vld [vmem:[%s1306] ss:$2 sm:$0xff]
    %s1308 = scalar_lea.vmem %s1048, 98 [#allocation2]
    %v1309 = vld [vmem:[%s1308] ss:$2 sm:$0xff]
    %s1310 = scalar_lea.vmem %s1048, 146 [#allocation2]
    %v1311 = vld [vmem:[%s1310] ss:$2 sm:$0xff]
    %s1312 = scalar_lea.vmem %s1048, 194 [#allocation2]
    %v1313 = vld [vmem:[%s1312] ss:$2 sm:$0xff]
    %s1314 = scalar_lea.vmem %s1048, 242 [#allocation2]
    %v1315 = vld [vmem:[%s1314] ss:$2 sm:$0xff]
    %s1316 = scalar_lea.vmem %s1048, 290 [#allocation2]
    %v1317 = vld [vmem:[%s1316] ss:$2 sm:$0xff]
    %s1318 = scalar_lea.vmem %s1048, 338 [#allocation2]
    %v1319 = vld [vmem:[%s1318] ss:$2 sm:$0xff]
    %s1320 = scalar_lea.vmem %s1048, 434 [#allocation2]
    %v1321 = vld [vmem:[%s1320] ss:$2 sm:$0xff]
    %s1322 = scalar_lea.vmem %s1048, 482 [#allocation2]
    %v1323 = vld [vmem:[%s1322] ss:$2 sm:$0xff]
    %s1324 = scalar_lea.vmem %s1048, 530 [#allocation2]
    %v1325 = vld [vmem:[%s1324] ss:$2 sm:$0xff]
    %s1326 = scalar_lea.vmem %s1048, 578 [#allocation2]
    %v1327 = vld [vmem:[%s1326] ss:$2 sm:$0xff]
    %s1328 = scalar_lea.vmem %s1048, 626 [#allocation2]
    %v1329 = vld [vmem:[%s1328] ss:$2 sm:$0xff]
    %s1330 = scalar_lea.vmem %s1048, 674 [#allocation2]
    %v1331 = vld [vmem:[%s1330] ss:$2 sm:$0xff]
    %s1332 = scalar_lea.vmem %s1048, 722 [#allocation2]
    %v1333 = vld [vmem:[%s1332] ss:$2 sm:$0xff]
    %s1334 = scalar_lea.vmem %s1048, 770 [#allocation2]
    %v1335 = vld [vmem:[%s1334] ss:$2 sm:$0xff]
    %v1336 = vpack.c.bf16 %v1307, %v1305
    %v1337 = vpack.c.bf16 %v1311, %v1309
    %v1338 = vpack.c.bf16 %v1315, %v1313
    %v1339 = vpack.c.bf16 %v1319, %v1317
    %v1340 = vpack.c.bf16 %v1323, %v1321
    %v1341 = vpack.c.bf16 %v1327, %v1325
    %v1342 = vpack.c.bf16 %v1331, %v1329
    %v1343 = vpack.c.bf16 %v1335, %v1333
    %v1352 = vunpack.c.l.b16 %v1336
    %v1353 = vunpack.c.h.b16 %v1336
    %v1354 = vunpack.c.l.b16 %v1337
    %v1355 = vunpack.c.h.b16 %v1337
    %v1356 = vunpack.c.l.b16 %v1338
    %v1357 = vunpack.c.h.b16 %v1338
    %v1358 = vunpack.c.l.b16 %v1339
    %v1359 = vunpack.c.h.b16 %v1339
    %v1360 = vunpack.c.l.b16 %v1340
    %v1361 = vunpack.c.h.b16 %v1340
    %v1362 = vunpack.c.l.b16 %v1341
    %v1363 = vunpack.c.h.b16 %v1341
    %v1364 = vunpack.c.l.b16 %v1342
    %v1365 = vunpack.c.h.b16 %v1342
    %v1366 = vunpack.c.l.b16 %v1343
    %v1367 = vunpack.c.h.b16 %v1343
    %v1368 = vpack.c.b16 %v1352, %v1352
    %v1369 = vpack.c.b16 %v1353, %v1353
    %v1370 = vpack.c.b16 %v1354, %v1354
    %v1371 = vpack.c.b16 %v1355, %v1355
    %v1372 = vpack.c.b16 %v1356, %v1356
    %v1373 = vpack.c.b16 %v1357, %v1357
    %v1374 = vpack.c.b16 %v1358, %v1358
    %v1375 = vpack.c.b16 %v1359, %v1359
    %v1376 = vpack.c.b16 %v1360, %v1360
    %v1377 = vpack.c.b16 %v1361, %v1361
    %v1378 = vpack.c.b16 %v1362, %v1362
    %v1379 = vpack.c.b16 %v1363, %v1363
    %v1380 = vpack.c.b16 %v1364, %v1364
    %v1381 = vpack.c.b16 %v1365, %v1365
    %v1382 = vpack.c.b16 %v1366, %v1366
    %v1383 = vpack.c.b16 %v1367, %v1367
    %1400 = vst.msk [vmem:[#allocation3 + $0x10] sm:$0xf] %vm375, %v1368
    %1401 = vst.msk [vmem:[#allocation3 + $0x24] sm:$0xf] %vm375, %v1369
    %1402 = vst.msk [vmem:[#allocation3 + $0x38] sm:$0xf] %vm375, %v1370
    %1403 = vst.msk [vmem:[#allocation3 + $0x4c] sm:$0xf] %vm375, %v1371
    %1404 = vst.msk [vmem:[#allocation3 + $0x60] sm:$0xf] %vm375, %v1372
    %1405 = vst.msk [vmem:[#allocation3 + $0x74] sm:$0xf] %vm375, %v1373
    %1406 = vst.msk [vmem:[#allocation3 + $0x88] sm:$0xf] %vm375, %v1374
    %1407 = vst.msk [vmem:[#allocation3 + $0x9c] sm:$0xf] %vm375, %v1375
    %1408 = vst.msk [vmem:[#allocation3 + $0xb0] sm:$0xf] %vm375, %v1376
    %1409 = vst.msk [vmem:[#allocation3 + $0xc4] sm:$0xf] %vm375, %v1377
    %1410 = vst.msk [vmem:[#allocation3 + $0xd8] sm:$0xf] %vm375, %v1378
    %1411 = vst.msk [vmem:[#allocation3 + $0xec] sm:$0xf] %vm375, %v1379
    %1412 = vst.msk [vmem:[#allocation3 + $0x100] sm:$0xf] %vm375, %v1380
    %1413 = vst.msk [vmem:[#allocation3 + $0x114] sm:$0xf] %vm375, %v1381
    %1414 = vst.msk [vmem:[#allocation3 + $0x128] sm:$0xf] %vm375, %v1382
    %1415 = vst.msk [vmem:[#allocation3 + $0x13c] sm:$0xf] %vm375, %v1383
    %v1416 = vld [vmem:[#allocation3] sm:$0xff]
    %v1417 = vld [vmem:[#allocation3 + $0x8] sm:$0xff]
    %v1418 = vld [vmem:[#allocation3 + $0x10] sm:$0xf]
    %v1419 = vld [vmem:[#allocation3 + $0x14] sm:$0xff]
    %v1420 = vld [vmem:[#allocation3 + $0x1c] sm:$0xff]
    %v1421 = vld [vmem:[#allocation3 + $0x24] sm:$0xf]
    %v1422 = vld [vmem:[#allocation3 + $0x28] sm:$0xff]
    %v1423 = vld [vmem:[#allocation3 + $0x30] sm:$0xff]
    %v1424 = vld [vmem:[#allocation3 + $0x38] sm:$0xf]
    %v1425 = vld [vmem:[#allocation3 + $0x3c] sm:$0xff]
    %v1426 = vld [vmem:[#allocation3 + $0x44] sm:$0xff]
    %v1427 = vld [vmem:[#allocation3 + $0x4c] sm:$0xf]
    %v1428 = vld [vmem:[#allocation3 + $0x50] sm:$0xff]
    %v1429 = vld [vmem:[#allocation3 + $0x58] sm:$0xff]
    %v1430 = vld [vmem:[#allocation3 + $0x60] sm:$0xf]
    %v1431 = vld [vmem:[#allocation3 + $0x64] sm:$0xff]
    %v1432 = vld [vmem:[#allocation3 + $0x6c] sm:$0xff]
    %v1433 = vld [vmem:[#allocation3 + $0x74] sm:$0xf]
    %v1434 = vld [vmem:[#allocation3 + $0x78] sm:$0xff]
    %v1435 = vld [vmem:[#allocation3 + $0x80] sm:$0xff]
    %v1436 = vld [vmem:[#allocation3 + $0x88] sm:$0xf]
    %v1437 = vld [vmem:[#allocation3 + $0x8c] sm:$0xff]
    %v1438 = vld [vmem:[#allocation3 + $0x94] sm:$0xff]
    %v1439 = vld [vmem:[#allocation3 + $0x9c] sm:$0xf]
    %v1440 = vld [vmem:[#allocation3 + $0xa0] sm:$0xff]
    %v1441 = vld [vmem:[#allocation3 + $0xa8] sm:$0xff]
    %v1442 = vld [vmem:[#allocation3 + $0xb0] sm:$0xf]
    %v1443 = vld [vmem:[#allocation3 + $0xb4] sm:$0xff]
    %v1444 = vld [vmem:[#allocation3 + $0xbc] sm:$0xff]
    %v1445 = vld [vmem:[#allocation3 + $0xc4] sm:$0xf]
    %v1446 = vld [vmem:[#allocation3 + $0xc8] sm:$0xff]
    %v1447 = vld [vmem:[#allocation3 + $0xd0] sm:$0xff]
    %v1448 = vld [vmem:[#allocation3 + $0xd8] sm:$0xf]
    %v1449 = vld [vmem:[#allocation3 + $0xdc] sm:$0xff]
    %v1450 = vld [vmem:[#allocation3 + $0xe4] sm:$0xff]
    %v1451 = vld [vmem:[#allocation3 + $0xec] sm:$0xf]
    %v1452 = vld [vmem:[#allocation3 + $0xf0] sm:$0xff]
    %v1453 = vld [vmem:[#allocation3 + $0xf8] sm:$0xff]
    %v1454 = vld [vmem:[#allocation3 + $0x100] sm:$0xf]
    %v1455 = vld [vmem:[#allocation3 + $0x104] sm:$0xff]
    %v1456 = vld [vmem:[#allocation3 + $0x10c] sm:$0xff]
    %v1457 = vld [vmem:[#allocation3 + $0x114] sm:$0xf]
    %v1458 = vld [vmem:[#allocation3 + $0x118] sm:$0xff]
    %v1459 = vld [vmem:[#allocation3 + $0x120] sm:$0xff]
    %v1460 = vld [vmem:[#allocation3 + $0x128] sm:$0xf]
    %v1461 = vld [vmem:[#allocation3 + $0x12c] sm:$0xff]
    %v1462 = vld [vmem:[#allocation3 + $0x134] sm:$0xff]
    %v1463 = vld [vmem:[#allocation3 + $0x13c] sm:$0xf]
    %v1464 = vld [vmem:[#allocation7] sm:$0xf]
    %v1465 = vld [vmem:[#allocation7 + $0x4] sm:$0xf]
    %v1466 = vld [vmem:[#allocation7 + $0x8] sm:$0xf]
    %v1467 = vld [vmem:[#allocation7 + $0xc] sm:$0xf]
    %v1468 = vld [vmem:[#allocation7 + $0x10] sm:$0xf]
    %v1469 = vld [vmem:[#allocation7 + $0x14] sm:$0xf]
    %v1470 = vld [vmem:[#allocation7 + $0x18] sm:$0xf]
    %v1471 = vld [vmem:[#allocation7 + $0x1c] sm:$0xf]
    %v1472 = vld [vmem:[#allocation7 + $0x20] sm:$0xf]
    %v1473 = vld [vmem:[#allocation7 + $0x24] sm:$0xf]
    %v1474 = vld [vmem:[#allocation7 + $0x28] sm:$0xf]
    %v1475 = vld [vmem:[#allocation7 + $0x2c] sm:$0xf]
    %v1476 = vld [vmem:[#allocation7 + $0x30] sm:$0xf]
    %v1477 = vld [vmem:[#allocation7 + $0x34] sm:$0xf]
    %v1478 = vld [vmem:[#allocation7 + $0x38] sm:$0xf]
    %v1479 = vld [vmem:[#allocation7 + $0x3c] sm:$0xf]
    %v1480 = vld [vmem:[#allocation7 + $0x40] sm:$0xf]
    %v1481 = vld [vmem:[#allocation7 + $0x44] sm:$0xf]
    %v1482 = vld [vmem:[#allocation7 + $0x48] sm:$0xf]
    %v1483 = vld [vmem:[#allocation7 + $0x4c] sm:$0xf]
    %v1484 = vld [vmem:[#allocation7 + $0x50] sm:$0xf]
    %v1485 = vld [vmem:[#allocation7 + $0x54] sm:$0xf]
    %v1486 = vld [vmem:[#allocation7 + $0x58] sm:$0xf]
    %v1487 = vld [vmem:[#allocation7 + $0x5c] sm:$0xf]
    %v1488 = vld [vmem:[#allocation7 + $0x60] sm:$0xf]
    %v1489 = vld [vmem:[#allocation7 + $0x64] sm:$0xf]
    %v1490 = vld [vmem:[#allocation7 + $0x68] sm:$0xf]
    %v1491 = vld [vmem:[#allocation7 + $0x6c] sm:$0xf]
    %v1492 = vld [vmem:[#allocation7 + $0x70] sm:$0xf]
    %v1493 = vld [vmem:[#allocation7 + $0x74] sm:$0xf]
    %v1494 = vld [vmem:[#allocation7 + $0x78] sm:$0xf]
    %v1495 = vld [vmem:[#allocation7 + $0x7c] sm:$0xf]
    %v1496 = vld [vmem:[#allocation7 + $0x80] sm:$0xf]
    %v1497 = vld [vmem:[#allocation7 + $0x84] sm:$0xf]
    %v1498 = vld [vmem:[#allocation7 + $0x88] sm:$0xf]
    %v1499 = vld [vmem:[#allocation7 + $0x8c] sm:$0xf]
    %v1500 = vld [vmem:[#allocation7 + $0x90] sm:$0xf]
    %v1501 = vld [vmem:[#allocation7 + $0x94] sm:$0xf]
    %v1502 = vld [vmem:[#allocation7 + $0x98] sm:$0xf]
    %v1503 = vld [vmem:[#allocation7 + $0x9c] sm:$0xf]
    %v1504 = vld [vmem:[#allocation7 + $0xa0] sm:$0xf]
    %v1505 = vld [vmem:[#allocation7 + $0xa4] sm:$0xf]
    %v1506 = vld [vmem:[#allocation7 + $0xa8] sm:$0xf]
    %v1507 = vld [vmem:[#allocation7 + $0xac] sm:$0xf]
    %v1508 = vld [vmem:[#allocation7 + $0xb0] sm:$0xf]
    %v1509 = vld [vmem:[#allocation7 + $0xb4] sm:$0xf]
    %v1510 = vld [vmem:[#allocation7 + $0xb8] sm:$0xf]
    %v1511 = vld [vmem:[#allocation7 + $0xbc] sm:$0xf]
    %v1512 = vld [vmem:[#allocation7 + $0xc0] sm:$0xf]
    %v1513 = vld [vmem:[#allocation7 + $0xc4] sm:$0xf]
    %v1514 = vld [vmem:[#allocation7 + $0xc8] sm:$0xf]
    %v1515 = vld [vmem:[#allocation7 + $0xcc] sm:$0xf]
    %v1516 = vld [vmem:[#allocation7 + $0xd0] sm:$0xf]
    %v1517 = vld [vmem:[#allocation7 + $0xd4] sm:$0xf]
    %v1518 = vld [vmem:[#allocation7 + $0xd8] sm:$0xf]
    %v1519 = vld [vmem:[#allocation7 + $0xdc] sm:$0xf]
    %v1520 = vld [vmem:[#allocation7 + $0xe0] sm:$0xf]
    %v1521 = vld [vmem:[#allocation7 + $0xe4] sm:$0xf]
    %v1522 = vld [vmem:[#allocation7 + $0xe8] sm:$0xf]
    %v1523 = vld [vmem:[#allocation7 + $0xec] sm:$0xf]
    %v1524 = vld [vmem:[#allocation7 + $0xf0] sm:$0xf]
    %v1525 = vld [vmem:[#allocation7 + $0xf4] sm:$0xf]
    %v1526 = vld [vmem:[#allocation7 + $0xf8] sm:$0xf]
    %v1527 = vld [vmem:[#allocation7 + $0xfc] sm:$0xf]
    %v1528 = vld [vmem:[#allocation7 + $0x100] sm:$0xf]
    %v1529 = vld [vmem:[#allocation7 + $0x104] sm:$0xf]
    %v1530 = vld [vmem:[#allocation7 + $0x108] sm:$0xf]
    %v1531 = vld [vmem:[#allocation7 + $0x10c] sm:$0xf]
    %v1532 = vld [vmem:[#allocation7 + $0x110] sm:$0xf]
    %v1533 = vld [vmem:[#allocation7 + $0x114] sm:$0xf]
    %v1534 = vld [vmem:[#allocation7 + $0x118] sm:$0xf]
    %v1535 = vld [vmem:[#allocation7 + $0x11c] sm:$0xf]
    %v1584 = vunpack.c.l.b16 %v1416
    %v1585 = vunpack.c.h.b16 %v1416
    %v1586 = vunpack.c.l.b16 %v1417
    %v1587 = vunpack.c.h.b16 %v1417
    %v1588 = vunpack.c.l.b16 %v1418
    %v1589 = vunpack.c.l.b16 %v1419
    %v1590 = vunpack.c.h.b16 %v1419
    %v1591 = vunpack.c.l.b16 %v1420
    %v1592 = vunpack.c.h.b16 %v1420
    %v1593 = vunpack.c.l.b16 %v1421
    %v1594 = vunpack.c.l.b16 %v1422
    %v1595 = vunpack.c.h.b16 %v1422
    %v1596 = vunpack.c.l.b16 %v1423
    %v1597 = vunpack.c.h.b16 %v1423
    %v1598 = vunpack.c.l.b16 %v1424
    %v1599 = vunpack.c.l.b16 %v1425
    %v1600 = vunpack.c.h.b16 %v1425
    %v1601 = vunpack.c.l.b16 %v1426
    %v1602 = vunpack.c.h.b16 %v1426
    %v1603 = vunpack.c.l.b16 %v1427
    %v1604 = vunpack.c.l.b16 %v1428
    %v1605 = vunpack.c.h.b16 %v1428
    %v1606 = vunpack.c.l.b16 %v1429
    %v1607 = vunpack.c.h.b16 %v1429
    %v1608 = vunpack.c.l.b16 %v1430
    %v1609 = vunpack.c.l.b16 %v1431
    %v1610 = vunpack.c.h.b16 %v1431
    %v1611 = vunpack.c.l.b16 %v1432
    %v1612 = vunpack.c.h.b16 %v1432
    %v1613 = vunpack.c.l.b16 %v1433
    %v1614 = vunpack.c.l.b16 %v1434
    %v1615 = vunpack.c.h.b16 %v1434
    %v1616 = vunpack.c.l.b16 %v1435
    %v1617 = vunpack.c.h.b16 %v1435
    %v1618 = vunpack.c.l.b16 %v1436
    %v1619 = vunpack.c.l.b16 %v1437
    %v1620 = vunpack.c.h.b16 %v1437
    %v1621 = vunpack.c.l.b16 %v1438
    %v1622 = vunpack.c.h.b16 %v1438
    %v1623 = vunpack.c.l.b16 %v1439
    %v1624 = vunpack.c.l.b16 %v1440
    %v1625 = vunpack.c.h.b16 %v1440
    %v1626 = vunpack.c.l.b16 %v1441
    %v1627 = vunpack.c.h.b16 %v1441
    %v1628 = vunpack.c.l.b16 %v1442
    %v1629 = vunpack.c.l.b16 %v1443
    %v1630 = vunpack.c.h.b16 %v1443
    %v1631 = vunpack.c.l.b16 %v1444
    %v1632 = vunpack.c.h.b16 %v1444
    %v1633 = vunpack.c.l.b16 %v1445
    %v1634 = vunpack.c.l.b16 %v1446
    %v1635 = vunpack.c.h.b16 %v1446
    %v1636 = vunpack.c.l.b16 %v1447
    %v1637 = vunpack.c.h.b16 %v1447
    %v1638 = vunpack.c.l.b16 %v1448
    %v1639 = vunpack.c.l.b16 %v1449
    %v1640 = vunpack.c.h.b16 %v1449
    %v1641 = vunpack.c.l.b16 %v1450
    %v1642 = vunpack.c.h.b16 %v1450
    %v1643 = vunpack.c.l.b16 %v1451
    %v1644 = vunpack.c.l.b16 %v1452
    %v1645 = vunpack.c.h.b16 %v1452
    %v1646 = vunpack.c.l.b16 %v1453
    %v1647 = vunpack.c.h.b16 %v1453
    %v1648 = vunpack.c.l.b16 %v1454
    %v1649 = vunpack.c.l.b16 %v1455
    %v1650 = vunpack.c.h.b16 %v1455
    %v1651 = vunpack.c.l.b16 %v1456
    %v1652 = vunpack.c.h.b16 %v1456
    %v1653 = vunpack.c.l.b16 %v1457
    %v1654 = vunpack.c.l.b16 %v1458
    %v1655 = vunpack.c.h.b16 %v1458
    %v1656 = vunpack.c.l.b16 %v1459
    %v1657 = vunpack.c.h.b16 %v1459
    %v1658 = vunpack.c.l.b16 %v1460
    %v1659 = vunpack.c.l.b16 %v1461
    %v1660 = vunpack.c.h.b16 %v1461
    %v1661 = vunpack.c.l.b16 %v1462
    %v1662 = vunpack.c.h.b16 %v1462
    %v1663 = vunpack.c.l.b16 %v1463
    %v1664 = vpack.c.b16 %v1589, %v1584
    %v1665 = vpack.c.b16 %v1590, %v1585
    %v1666 = vpack.c.b16 %v1591, %v1586
    %v1667 = vpack.c.b16 %v1592, %v1587
    %v1668 = vpack.c.b16 %v1593, %v1588
    %v1669 = vpack.c.b16 %v1599, %v1594
    %v1670 = vpack.c.b16 %v1600, %v1595
    %v1671 = vpack.c.b16 %v1601, %v1596
    %v1672 = vpack.c.b16 %v1602, %v1597
    %v1673 = vpack.c.b16 %v1603, %v1598
    %v1674 = vpack.c.b16 %v1609, %v1604
    %v1675 = vpack.c.b16 %v1610, %v1605
    %v1676 = vpack.c.b16 %v1611, %v1606
    %v1677 = vpack.c.b16 %v1612, %v1607
    %v1678 = vpack.c.b16 %v1613, %v1608
    %v1679 = vpack.c.b16 %v1619, %v1614
    %v1680 = vpack.c.b16 %v1620, %v1615
    %v1681 = vpack.c.b16 %v1621, %v1616
    %v1682 = vpack.c.b16 %v1622, %v1617
    %v1683 = vpack.c.b16 %v1623, %v1618
    %v1684 = vpack.c.b16 %v1629, %v1624
    %v1685 = vpack.c.b16 %v1630, %v1625
    %v1686 = vpack.c.b16 %v1631, %v1626
    %v1687 = vpack.c.b16 %v1632, %v1627
    %v1688 = vpack.c.b16 %v1633, %v1628
    %v1689 = vpack.c.b16 %v1639, %v1634
    %v1690 = vpack.c.b16 %v1640, %v1635
    %v1691 = vpack.c.b16 %v1641, %v1636
    %v1692 = vpack.c.b16 %v1642, %v1637
    %v1693 = vpack.c.b16 %v1643, %v1638
    %v1694 = vpack.c.b16 %v1649, %v1644
    %v1695 = vpack.c.b16 %v1650, %v1645
    %v1696 = vpack.c.b16 %v1651, %v1646
    %v1697 = vpack.c.b16 %v1652, %v1647
    %v1698 = vpack.c.b16 %v1653, %v1648
    %v1699 = vpack.c.b16 %v1659, %v1654
    %v1700 = vpack.c.b16 %v1660, %v1655
    %v1701 = vpack.c.b16 %v1661, %v1656
    %v1702 = vpack.c.b16 %v1662, %v1657
    %v1703 = vpack.c.b16 %v1663, %v1658
    %v1808 = vunpack.c.l.b16 %v1464
    %v1809 = vunpack.c.l.b16 %v1465
    %v1810 = vunpack.c.l.b16 %v1466
    %v1811 = vunpack.c.l.b16 %v1467
    %v1812 = vunpack.c.l.b16 %v1468
    %v1813 = vunpack.c.l.b16 %v1469
    %v1814 = vunpack.c.l.b16 %v1470
    %v1815 = vunpack.c.l.b16 %v1471
    %v1816 = vunpack.c.l.b16 %v1472
    %v1817 = vunpack.c.l.b16 %v1473
    %v1818 = vunpack.c.l.b16 %v1474
    %v1819 = vunpack.c.l.b16 %v1475
    %v1820 = vunpack.c.l.b16 %v1476
    %v1821 = vunpack.c.l.b16 %v1477
    %v1822 = vunpack.c.l.b16 %v1478
    %v1823 = vunpack.c.l.b16 %v1479
    %v1824 = vunpack.c.l.b16 %v1480
    %v1825 = vunpack.c.l.b16 %v1481
    %v1826 = vunpack.c.l.b16 %v1482
    %v1827 = vunpack.c.l.b16 %v1483
    %v1828 = vunpack.c.l.b16 %v1484
    %v1829 = vunpack.c.l.b16 %v1485
    %v1830 = vunpack.c.l.b16 %v1486
    %v1831 = vunpack.c.l.b16 %v1487
    %v1832 = vunpack.c.l.b16 %v1488
    %v1833 = vunpack.c.l.b16 %v1489
    %v1834 = vunpack.c.l.b16 %v1490
    %v1835 = vunpack.c.l.b16 %v1491
    %v1836 = vunpack.c.l.b16 %v1492
    %v1837 = vunpack.c.l.b16 %v1493
    %v1838 = vunpack.c.l.b16 %v1494
    %v1839 = vunpack.c.l.b16 %v1495
    %v1840 = vunpack.c.l.b16 %v1496
    %v1841 = vunpack.c.l.b16 %v1497
    %v1842 = vunpack.c.l.b16 %v1498
    %v1843 = vunpack.c.l.b16 %v1499
    %v1844 = vunpack.c.l.b16 %v1500
    %v1845 = vunpack.c.l.b16 %v1501
    %v1846 = vunpack.c.l.b16 %v1502
    %v1847 = vunpack.c.l.b16 %v1503
    %v1848 = vunpack.c.l.b16 %v1504
    %v1849 = vunpack.c.l.b16 %v1505
    %v1850 = vunpack.c.l.b16 %v1506
    %v1851 = vunpack.c.l.b16 %v1507
    %v1852 = vunpack.c.l.b16 %v1508
    %v1853 = vunpack.c.l.b16 %v1509
    %v1854 = vunpack.c.l.b16 %v1510
    %v1855 = vunpack.c.l.b16 %v1511
    %v1856 = vunpack.c.l.b16 %v1512
    %v1857 = vunpack.c.l.b16 %v1513
    %v1858 = vunpack.c.l.b16 %v1514
    %v1859 = vunpack.c.l.b16 %v1515
    %v1860 = vunpack.c.l.b16 %v1516
    %v1861 = vunpack.c.l.b16 %v1517
    %v1862 = vunpack.c.l.b16 %v1518
    %v1863 = vunpack.c.l.b16 %v1519
    %v1864 = vunpack.c.l.b16 %v1520
    %v1865 = vunpack.c.l.b16 %v1521
    %v1866 = vunpack.c.l.b16 %v1522
    %v1867 = vunpack.c.l.b16 %v1523
    %v1868 = vunpack.c.l.b16 %v1524
    %v1869 = vunpack.c.l.b16 %v1525
    %v1870 = vunpack.c.l.b16 %v1526
    %v1871 = vunpack.c.l.b16 %v1527
    %v1872 = vunpack.c.l.b16 %v1528
    %v1873 = vunpack.c.l.b16 %v1529
    %v1874 = vunpack.c.l.b16 %v1530
    %v1875 = vunpack.c.l.b16 %v1531
    %v1876 = vunpack.c.l.b16 %v1532
    %v1877 = vunpack.c.l.b16 %v1533
    %v1878 = vunpack.c.l.b16 %v1534
    %v1879 = vunpack.c.l.b16 %v1535
    %v1880 = vpack.c.b16 %v1809, %v1808
    %v1881 = vpack.c.b16 %v1811, %v1810
    %v1882 = vpack.c.b16 %v1813, %v1812
    %v1883 = vpack.c.b16 %v1815, %v1814
    %v1884 = vpack.c.b16 %v1817, %v1816
    %v1885 = vpack.c.b16 %v1819, %v1818
    %v1886 = vpack.c.b16 %v1821, %v1820
    %v1887 = vpack.c.b16 %v1823, %v1822
    %v1888 = vpack.c.b16 %v1825, %v1824
    %v1889 = vpack.c.b16 %v1827, %v1826
    %v1890 = vpack.c.b16 %v1829, %v1828
    %v1891 = vpack.c.b16 %v1831, %v1830
    %v1892 = vpack.c.b16 %v1833, %v1832
    %v1893 = vpack.c.b16 %v1835, %v1834
    %v1894 = vpack.c.b16 %v1837, %v1836
    %v1895 = vpack.c.b16 %v1839, %v1838
    %v1896 = vpack.c.b16 %v1841, %v1840
    %v1897 = vpack.c.b16 %v1843, %v1842
    %v1898 = vpack.c.b16 %v1845, %v1844
    %v1899 = vpack.c.b16 %v1847, %v1846
    %v1900 = vpack.c.b16 %v1849, %v1848
    %v1901 = vpack.c.b16 %v1851, %v1850
    %v1902 = vpack.c.b16 %v1853, %v1852
    %v1903 = vpack.c.b16 %v1855, %v1854
    %v1904 = vpack.c.b16 %v1857, %v1856
    %v1905 = vpack.c.b16 %v1859, %v1858
    %v1906 = vpack.c.b16 %v1861, %v1860
    %v1907 = vpack.c.b16 %v1863, %v1862
    %v1908 = vpack.c.b16 %v1865, %v1864
    %v1909 = vpack.c.b16 %v1867, %v1866
    %v1910 = vpack.c.b16 %v1869, %v1868
    %v1911 = vpack.c.b16 %v1871, %v1870
    %v1912 = vpack.c.b16 %v1873, %v1872
    %v1913 = vpack.c.b16 %v1875, %v1874
    %v1914 = vpack.c.b16 %v1877, %v1876
    %v1915 = vpack.c.b16 %v1879, %v1878
    %v1953 = vsel %vm41, %v1668, 0
    %v1956 = vsel %vm41, %v1673, 0
    %v1959 = vsel %vm41, %v1678, 0
    %v1962 = vsel %vm41, %v1683, 0
    %v1965 = vsel %vm41, %v1688, 0
    %v1968 = vsel %vm41, %v1693, 0
    %v1971 = vsel %vm41, %v1698, 0
    %v1974 = vsel %vm41, %v1703, 0
    %1976 = vmatprep.subr.bf16.mxu0 0
    %1977 = vmatpush1.bf16.msra.mxu0 %v1887
    %1978 = vmatprep.subr.bf16.mxu0 0
    %1979 = vmatpush1.bf16.msra.mxu0 %v1886
    %1980 = vmatprep.subr.bf16.mxu0 0
    %1981 = vmatpush1.bf16.msra.mxu0 %v1885
    %1982 = vmatprep.subr.bf16.mxu0 0
    %1983 = vmatpush1.bf16.msra.mxu0 %v1884
    %1984 = vmatprep.subr.bf16.mxu0 0
    %1985 = vmatpush1.bf16.msra.mxu0 %v1883
    %1986 = vmatprep.subr.bf16.mxu0 0
    %1987 = vmatpush1.bf16.msra.mxu0 %v1882
    %1988 = vmatprep.subr.bf16.mxu0 0
    %1989 = vmatpush1.bf16.msra.mxu0 %v1881
    %1990 = vmatprep.subr.bf16.mxu0 0
    %1991 = vmatpush1.bf16.msra.mxu0 %v1880
    %1992 = vmatprep.subr.bf16.mxu0 0
    %1993 = vmatpush2.bf16.msra.mxu0 %v1895
    %1994 = vmatprep.subr.bf16.mxu0 0
    %1995 = vmatpush2.bf16.msra.mxu0 %v1894
    %1996 = vmatprep.subr.bf16.mxu0 0
    %1997 = vmatpush2.bf16.msra.mxu0 %v1893
    %1998 = vmatprep.subr.bf16.mxu0 0
    %1999 = vmatpush2.bf16.msra.mxu0 %v1892
    %2000 = vmatprep.subr.bf16.mxu0 0
    %2001 = vmatpush2.bf16.msra.mxu0 %v1891
    %2002 = vmatprep.subr.bf16.mxu0 0
    %2003 = vmatpush2.bf16.msra.mxu0 %v1890
    %2004 = vmatprep.subr.bf16.mxu0 0
    %2005 = vmatpush2.bf16.msra.mxu0 %v1889
    %2006 = vmatprep.subr.bf16.mxu0 0
    %2007 = vmatpush2.bf16.msra.mxu0 %v1888
    %2008 = vmatprep.mubr.bf16.mxu0 %v1665
    %2009 = vmatmul.mubr.bf16.gmra.mxu0 %v1664
    %v2010 = vpop.f32.mrf.mxu0
    %v2011 = vadd.f32 0.0, %v2010
    %v2012 = vpop.f32.mrf.mxu0
    %v2013 = vpop.f32.mrf.mxu0
    %v2014 = vadd.f32 0.0, %v2013
    %v2015 = vpop.f32.mrf.mxu0
    %2016 = vmatprep.mubr.bf16.mxu0 %v1670
    %2017 = vmatmul.mubr.bf16.gmra.mxu0 %v1669
    %v2018 = vpop.f32.mrf.mxu0
    %v2019 = vadd.f32 0.0, %v2018
    %v2020 = vpop.f32.mrf.mxu0
    %v2021 = vpop.f32.mrf.mxu0
    %v2022 = vadd.f32 0.0, %v2021
    %v2023 = vpop.f32.mrf.mxu0
    %2024 = vmatprep.mubr.bf16.mxu0 %v1675
    %2025 = vmatmul.mubr.bf16.gmra.mxu0 %v1674
    %v2026 = vpop.f32.mrf.mxu0
    %v2027 = vadd.f32 0.0, %v2026
    %v2028 = vpop.f32.mrf.mxu0
    %v2029 = vpop.f32.mrf.mxu0
    %v2030 = vadd.f32 0.0, %v2029
    %v2031 = vpop.f32.mrf.mxu0
    %2032 = vmatprep.mubr.bf16.mxu0 %v1680
    %2033 = vmatmul.mubr.bf16.gmra.mxu0 %v1679
    %v2034 = vpop.f32.mrf.mxu0
    %v2035 = vadd.f32 0.0, %v2034
    %v2036 = vpop.f32.mrf.mxu0
    %v2037 = vpop.f32.mrf.mxu0
    %v2038 = vadd.f32 0.0, %v2037
    %v2039 = vpop.f32.mrf.mxu0
    %2040 = vmatprep.mubr.bf16.mxu0 %v1685
    %2041 = vmatmul.mubr.bf16.gmra.mxu0 %v1684
    %v2042 = vpop.f32.mrf.mxu0
    %v2043 = vadd.f32 0.0, %v2042
    %v2044 = vpop.f32.mrf.mxu0
    %v2045 = vpop.f32.mrf.mxu0
    %v2046 = vadd.f32 0.0, %v2045
    %v2047 = vpop.f32.mrf.mxu0
    %2048 = vmatprep.mubr.bf16.mxu0 %v1690
    %2049 = vmatmul.mubr.bf16.gmra.mxu0 %v1689
    %v2050 = vpop.f32.mrf.mxu0
    %v2051 = vadd.f32 0.0, %v2050
    %v2052 = vpop.f32.mrf.mxu0
    %v2053 = vpop.f32.mrf.mxu0
    %v2054 = vadd.f32 0.0, %v2053
    %v2055 = vpop.f32.mrf.mxu0
    %2056 = vmatprep.mubr.bf16.mxu0 %v1695
    %2057 = vmatmul.mubr.bf16.gmra.mxu0 %v1694
    %v2058 = vpop.f32.mrf.mxu0
    %v2059 = vadd.f32 0.0, %v2058
    %v2060 = vpop.f32.mrf.mxu0
    %v2061 = vpop.f32.mrf.mxu0
    %v2062 = vadd.f32 0.0, %v2061
    %v2063 = vpop.f32.mrf.mxu0
    %2064 = vmatprep.mubr.bf16.mxu0 %v1700
    %2065 = vmatmul.mubr.bf16.gmra.mxu0 %v1699
    %v2066 = vpop.f32.mrf.mxu0
    %v2067 = vadd.f32 0.0, %v2066
    %v2068 = vpop.f32.mrf.mxu0
    %v2069 = vpop.f32.mrf.mxu0
    %v2070 = vadd.f32 0.0, %v2069
    %v2071 = vpop.f32.mrf.mxu0
    %2072 = vdwg.mxu0
    %2073 = vmatprep.subr.bf16.mxu0 0
    %2074 = vmatpush1.bf16.msra.mxu0 %v1903
    %2075 = vmatprep.subr.bf16.mxu0 0
    %2076 = vmatpush1.bf16.msra.mxu0 %v1902
    %2077 = vmatprep.subr.bf16.mxu0 0
    %2078 = vmatpush1.bf16.msra.mxu0 %v1901
    %2079 = vmatprep.subr.bf16.mxu0 0
    %2080 = vmatpush1.bf16.msra.mxu0 %v1900
    %2081 = vmatprep.subr.bf16.mxu0 0
    %2082 = vmatpush1.bf16.msra.mxu0 %v1899
    %2083 = vmatprep.subr.bf16.mxu0 0
    %2084 = vmatpush1.bf16.msra.mxu0 %v1898
    %2085 = vmatprep.subr.bf16.mxu0 0
    %2086 = vmatpush1.bf16.msra.mxu0 %v1897
    %2087 = vmatprep.subr.bf16.mxu0 0
    %2088 = vmatpush1.bf16.msra.mxu0 %v1896
    %2089 = vmatprep.subr.bf16.mxu0 0
    %2090 = vmatpush2.bf16.msra.mxu0 %v1911
    %2091 = vmatprep.subr.bf16.mxu0 0
    %2092 = vmatpush2.bf16.msra.mxu0 %v1910
    %2093 = vmatprep.subr.bf16.mxu0 0
    %2094 = vmatpush2.bf16.msra.mxu0 %v1909
    %2095 = vmatprep.subr.bf16.mxu0 0
    %2096 = vmatpush2.bf16.msra.mxu0 %v1908
    %2097 = vmatprep.subr.bf16.mxu0 0
    %2098 = vmatpush2.bf16.msra.mxu0 %v1907
    %2099 = vmatprep.subr.bf16.mxu0 0
    %2100 = vmatpush2.bf16.msra.mxu0 %v1906
    %2101 = vmatprep.subr.bf16.mxu0 0
    %2102 = vmatpush2.bf16.msra.mxu0 %v1905
    %2103 = vmatprep.subr.bf16.mxu0 0
    %2104 = vmatpush2.bf16.msra.mxu0 %v1904
    %2105 = vmatprep.mubr.bf16.mxu0 %v1667
    %2106 = vmatmul.mubr.bf16.gmra.mxu0 %v1666
    %v2107 = vpop.f32.mrf.mxu0
    %v2108 = vadd.f32 %v2011, %v2107
    %v2109 = vpop.f32.mrf.mxu0
    %v2110 = vpop.f32.mrf.mxu0
    %v2111 = vadd.f32 %v2014, %v2110
    %v2112 = vpop.f32.mrf.mxu0
    %2113 = vmatprep.mubr.bf16.mxu0 %v1672
    %2114 = vmatmul.mubr.bf16.gmra.mxu0 %v1671
    %v2115 = vpop.f32.mrf.mxu0
    %v2116 = vadd.f32 %v2019, %v2115
    %v2117 = vpop.f32.mrf.mxu0
    %v2118 = vpop.f32.mrf.mxu0
    %v2119 = vadd.f32 %v2022, %v2118
    %v2120 = vpop.f32.mrf.mxu0
    %2121 = vmatprep.mubr.bf16.mxu0 %v1677
    %2122 = vmatmul.mubr.bf16.gmra.mxu0 %v1676
    %v2123 = vpop.f32.mrf.mxu0
    %v2124 = vadd.f32 %v2027, %v2123
    %v2125 = vpop.f32.mrf.mxu0
    %v2126 = vpop.f32.mrf.mxu0
    %v2127 = vadd.f32 %v2030, %v2126
    %v2128 = vpop.f32.mrf.mxu0
    %2129 = vmatprep.mubr.bf16.mxu0 %v1682
    %2130 = vmatmul.mubr.bf16.gmra.mxu0 %v1681
    %v2131 = vpop.f32.mrf.mxu0
    %v2132 = vadd.f32 %v2035, %v2131
    %v2133 = vpop.f32.mrf.mxu0
    %v2134 = vpop.f32.mrf.mxu0
    %v2135 = vadd.f32 %v2038, %v2134
    %v2136 = vpop.f32.mrf.mxu0
    %2137 = vmatprep.mubr.bf16.mxu0 %v1687
    %2138 = vmatmul.mubr.bf16.gmra.mxu0 %v1686
    %v2139 = vpop.f32.mrf.mxu0
    %v2140 = vadd.f32 %v2043, %v2139
    %v2141 = vpop.f32.mrf.mxu0
    %v2142 = vpop.f32.mrf.mxu0
    %v2143 = vadd.f32 %v2046, %v2142
    %v2144 = vpop.f32.mrf.mxu0
    %2145 = vmatprep.mubr.bf16.mxu0 %v1692
    %2146 = vmatmul.mubr.bf16.gmra.mxu0 %v1691
    %v2147 = vpop.f32.mrf.mxu0
    %v2148 = vadd.f32 %v2051, %v2147
    %v2149 = vpop.f32.mrf.mxu0
    %v2150 = vpop.f32.mrf.mxu0
    %v2151 = vadd.f32 %v2054, %v2150
    %v2152 = vpop.f32.mrf.mxu0
    %2153 = vmatprep.mubr.bf16.mxu0 %v1697
    %2154 = vmatmul.mubr.bf16.gmra.mxu0 %v1696
    %v2155 = vpop.f32.mrf.mxu0
    %v2156 = vadd.f32 %v2059, %v2155
    %v2157 = vpop.f32.mrf.mxu0
    %v2158 = vpop.f32.mrf.mxu0
    %v2159 = vadd.f32 %v2062, %v2158
    %v2160 = vpop.f32.mrf.mxu0
    %2161 = vmatprep.mubr.bf16.mxu0 %v1702
    %2162 = vmatmul.mubr.bf16.gmra.mxu0 %v1701
    %v2163 = vpop.f32.mrf.mxu0
    %v2164 = vadd.f32 %v2067, %v2163
    %v2165 = vpop.f32.mrf.mxu0
    %v2166 = vpop.f32.mrf.mxu0
    %v2167 = vadd.f32 %v2070, %v2166
    %v2168 = vpop.f32.mrf.mxu0
    %2169 = vdwg.mxu0
    %2170 = vmatprep.subr.bf16.mxu0 0
    %2171 = vmatpush1.bf16.msra.mxu0 0
    %2172 = vmatprep.subr.bf16.mxu0 0
    %2173 = vmatpush1.bf16.msra.mxu0 0
    %2174 = vmatprep.subr.bf16.mxu0 0
    %2175 = vmatpush1.bf16.msra.mxu0 0
    %2176 = vmatprep.subr.bf16.mxu0 0
    %2177 = vmatpush1.bf16.msra.mxu0 0
    %2178 = vmatprep.subr.bf16.mxu0 0
    %2179 = vmatpush1.bf16.msra.mxu0 %v1915
    %2180 = vmatprep.subr.bf16.mxu0 0
    %2181 = vmatpush1.bf16.msra.mxu0 %v1914
    %2182 = vmatprep.subr.bf16.mxu0 0
    %2183 = vmatpush1.bf16.msra.mxu0 %v1913
    %2184 = vmatprep.subr.bf16.mxu0 0
    %2185 = vmatpush1.bf16.msra.mxu0 %v1912
    %2186 = vmatprep.subr.bf16.mxu0 0
    %2187 = vmatpush2.bf16.msra.mxu0 0
    %2188 = vmatprep.subr.bf16.mxu0 0
    %2189 = vmatpush2.bf16.msra.mxu0 0
    %2190 = vmatprep.subr.bf16.mxu0 0
    %2191 = vmatpush2.bf16.msra.mxu0 0
    %2192 = vmatprep.subr.bf16.mxu0 0
    %2193 = vmatpush2.bf16.msra.mxu0 0
    %2194 = vmatprep.subr.bf16.mxu0 0
    %2195 = vmatpush2.bf16.msra.mxu0 0
    %2196 = vmatprep.subr.bf16.mxu0 0
    %2197 = vmatpush2.bf16.msra.mxu0 0
    %2198 = vmatprep.subr.bf16.mxu0 0
    %2199 = vmatpush2.bf16.msra.mxu0 0
    %2200 = vmatprep.subr.bf16.mxu0 0
    %2201 = vmatpush2.bf16.msra.mxu0 0
    %2202 = vmatprep.mubr.bf16.mxu0 0
    %2203 = vmatmul.mubr.bf16.gmra.mxu0 %v1953
    %v2204 = vpop.f32.mrf.mxu0
    %v2205 = vadd.f32 %v2108, %v2204
    %v2206 = vpop.f32.mrf.mxu0
    %v2207 = vpop.f32.mrf.mxu0
    %v2208 = vadd.f32 %v2111, %v2207
    %v2209 = vpop.f32.mrf.mxu0
    %2210 = vmatprep.mubr.bf16.mxu0 0
    %2211 = vmatmul.mubr.bf16.gmra.mxu0 %v1956
    %v2212 = vpop.f32.mrf.mxu0
    %v2213 = vadd.f32 %v2116, %v2212
    %v2214 = vpop.f32.mrf.mxu0
    %v2215 = vpop.f32.mrf.mxu0
    %v2216 = vadd.f32 %v2119, %v2215
    %v2217 = vpop.f32.mrf.mxu0
    %2218 = vmatprep.mubr.bf16.mxu0 0
    %2219 = vmatmul.mubr.bf16.gmra.mxu0 %v1959
    %v2220 = vpop.f32.mrf.mxu0
    %v2221 = vadd.f32 %v2124, %v2220
    %v2222 = vpop.f32.mrf.mxu0
    %v2223 = vpop.f32.mrf.mxu0
    %v2224 = vadd.f32 %v2127, %v2223
    %v2225 = vpop.f32.mrf.mxu0
    %2226 = vmatprep.mubr.bf16.mxu0 0
    %2227 = vmatmul.mubr.bf16.gmra.mxu0 %v1962
    %v2228 = vpop.f32.mrf.mxu0
    %v2229 = vadd.f32 %v2132, %v2228
    %v2230 = vpop.f32.mrf.mxu0
    %v2231 = vpop.f32.mrf.mxu0
    %v2232 = vadd.f32 %v2135, %v2231
    %v2233 = vpop.f32.mrf.mxu0
    %2234 = vmatprep.mubr.bf16.mxu0 0
    %2235 = vmatmul.mubr.bf16.gmra.mxu0 %v1965
    %v2236 = vpop.f32.mrf.mxu0
    %v2237 = vadd.f32 %v2140, %v2236
    %v2238 = vpop.f32.mrf.mxu0
    %v2239 = vpop.f32.mrf.mxu0
    %v2240 = vadd.f32 %v2143, %v2239
    %v2241 = vpop.f32.mrf.mxu0
    %2242 = vmatprep.mubr.bf16.mxu0 0
    %2243 = vmatmul.mubr.bf16.gmra.mxu0 %v1968
    %v2244 = vpop.f32.mrf.mxu0
    %v2245 = vadd.f32 %v2148, %v2244
    %v2246 = vpop.f32.mrf.mxu0
    %v2247 = vpop.f32.mrf.mxu0
    %v2248 = vadd.f32 %v2151, %v2247
    %v2249 = vpop.f32.mrf.mxu0
    %2250 = vmatprep.mubr.bf16.mxu0 0
    %2251 = vmatmul.mubr.bf16.gmra.mxu0 %v1971
    %v2252 = vpop.f32.mrf.mxu0
    %v2253 = vadd.f32 %v2156, %v2252
    %v2254 = vpop.f32.mrf.mxu0
    %v2255 = vpop.f32.mrf.mxu0
    %v2256 = vadd.f32 %v2159, %v2255
    %v2257 = vpop.f32.mrf.mxu0
    %2258 = vmatprep.mubr.bf16.mxu0 0
    %2259 = vmatmul.mubr.bf16.gmra.mxu0 %v1974
    %v2260 = vpop.f32.mrf.mxu0
    %v2261 = vadd.f32 %v2164, %v2260
    %v2262 = vpop.f32.mrf.mxu0
    %v2263 = vpop.f32.mrf.mxu0
    %v2264 = vadd.f32 %v2167, %v2263
    %v2265 = vpop.f32.mrf.mxu0
    %2266 = vdwg.mxu0
    %2267 = vst [vmem:[#allocation9] sm:$0xff] %v2205
    %2268 = vst [vmem:[#allocation9 + $0x8] sm:$0xff] %v2208
    %2269 = vst [vmem:[#allocation9 + $0x10] sm:$0xff] %v2213
    %2270 = vst [vmem:[#allocation9 + $0x18] sm:$0xff] %v2216
    %2271 = vst [vmem:[#allocation9 + $0x20] sm:$0xff] %v2221
    %2272 = vst [vmem:[#allocation9 + $0x28] sm:$0xff] %v2224
    %2273 = vst [vmem:[#allocation9 + $0x30] sm:$0xff] %v2229
    %2274 = vst [vmem:[#allocation9 + $0x38] sm:$0xff] %v2232
    %2275 = vst [vmem:[#allocation9 + $0x40] sm:$0xff] %v2237
    %2276 = vst [vmem:[#allocation9 + $0x48] sm:$0xff] %v2240
    %2277 = vst [vmem:[#allocation9 + $0x50] sm:$0xff] %v2245
    %2278 = vst [vmem:[#allocation9 + $0x58] sm:$0xff] %v2248
    %2279 = vst [vmem:[#allocation9 + $0x60] sm:$0xff] %v2253
    %2280 = vst [vmem:[#allocation9 + $0x68] sm:$0xff] %v2256
    %2281 = vst [vmem:[#allocation9 + $0x70] sm:$0xff] %v2261
    %2282 = vst [vmem:[#allocation9 + $0x78] sm:$0xff] %v2264
    // Predicated region
    $region18: #{simplenet_forward.1} parent=1 // pred_check
      _
    $region19: #{simplenet_forward.1} parent=1 // pred_check_branch
      %2284 = sbr.rel (0) target = $region21
    $region20: #{simplenet_forward.1} parent=1 // pred_region
      %s2286 = ssub.s32 2048, 2048
      %2287 = vsyncadd [#allocation6], %s2286
      %s2288 = sshll.u32 [#allocation9], 4
      %s2289 = int_to_ptr.vmem [resolvable:$true] %s2288
      %2294 = dma.vmem_to_hbm [thread:$0]  %s2289, 2048, %s2, [#allocation6], 128, 128, 8
    $region21: #{simplenet_forward.1} parent=1 // pred_fallthru
      _
    // Predicated region
    $region22: #{simplenet_forward.1} parent=1 // pred_check
      _
    $region23: #{simplenet_forward.1} parent=1 // pred_check_branch
      %2296 = sbr.rel (0) target = $region25
    $region24: #{simplenet_forward.1} parent=1 // pred_region
      %2297 = dma.done [#allocation6], 2048
    $region25: #{simplenet_forward.1} parent=1 // pred_fallthru
      _
    %2298 = vsyncpa [#allocation5], 1
    %2299 = vsyncpa [#allocation8], 1
    %2300 = vsyncpa [#allocation6], 1

</llo_original>
